<compile_context>
chip_gen: v5e
topology: v5e:2x2
jax: 0.10.0
libtpu: 0.0.40
codegen_flags: <defaults>
</compile_context>

<pallas_src>
import jax
import jax.numpy as jnp
from jax.experimental import pallas as pl
from jax.experimental.pallas import tpu as pltpu

# (in_features, out_features) for fc1 .. fc11
LAYER_DIMS = [
    (14, 26), (26, 28), (28, 18), (18, 15), (15, 15),
    (15, 12), (12, 12), (12, 10), (10, 6), (6, 6), (6, 1),
]
NUM_LAYERS = len(LAYER_DIMS)
LANE = 128  # fixed lane width for activations / packed params


def _round_up(n, m):
    return ((n + m - 1) // m) * m


def mlp_kernel(x_ref, w_ref, b_ref, out_ref):
    """x_ref: (tb, 128) zero-padded activations.
    w_ref: (11, 128, 128) zero-padded weights (in, out layout).
    b_ref: (11, 1, 128) zero-padded biases.
    out_ref: (tb, 128) slab; only column 0 is meaningful."""
    h = x_ref[...]  # (tb, 128) f32, lanes >= 14 are exactly zero
    for i in range(NUM_LAYERS):
        w = w_ref[i]        # (128, 128)
        b = b_ref[i]        # (1, 128)
        h = jnp.dot(h, w, preferred_element_type=jnp.float32) + b
        if i < NUM_LAYERS - 1:
            h = jnp.maximum(h, 0.0)       # ReLU; padded lanes stay 0
        else:
            h = jax.nn.sigmoid(h)         # final sigmoid (padded lanes -> 0.5, discarded)
    out_ref[...] = h.astype(out_ref.dtype)


def pack_params(params):
    """params: flat list [w1, b1, ..., w11, b11], w_i (din, dout), b_i (dout,)
    or (1, dout).  Returns zero-padded (11,128,128) weights, (11,1,128) biases."""
    w_packed = jnp.zeros((NUM_LAYERS, LANE, LANE), jnp.float32)
    b_packed = jnp.zeros((NUM_LAYERS, 1, LANE), jnp.float32)
    for i, (din, dout) in enumerate(LAYER_DIMS):
        w = jnp.asarray(params[2 * i], jnp.float32).reshape(din, dout)
        b = jnp.asarray(params[2 * i + 1], jnp.float32).reshape(dout)
        w_packed = w_packed.at[i, :din, :dout].set(w)
        b_packed = b_packed.at[i, 0, :dout].set(b)
    return w_packed, b_packed


def mlp_forward(x, w_packed, b_packed, *, tb=512):
    """x: (B, 14) float32.  Returns (B, 1) float32."""
    B, din0 = x.shape
    assert din0 == LAYER_DIMS[0][0]

    # Cap the batch tile so the grid has >=2 iterations when B allows it
    # (v7x has 2 TensorCores; 'parallel' semantics shards the grid).
    tb = max(8, min(tb, _round_up(max(B // 2, 1), 8)))
    B_pad = _round_up(B, tb)

    # Pad batch to a tile multiple and features to a full 128-lane width.
    x_pad = jnp.zeros((B_pad, LANE), jnp.float32).at[:B, :din0].set(x)

    out = pl.pallas_call(
        mlp_kernel,
        out_shape=jax.ShapeDtypeStruct((B_pad, LANE), jnp.float32),
        grid=(B_pad // tb,),
        in_specs=[
            pl.BlockSpec((tb, LANE), lambda i: (i, 0)),
            # Packed params: full-array blocks, same block index every step
            # (resident in VMEM across the whole grid, single DMA ~0.7 MB).
            pl.BlockSpec((NUM_LAYERS, LANE, LANE), lambda i: (0, 0, 0)),
            pl.BlockSpec((NUM_LAYERS, 1, LANE), lambda i: (0, 0, 0)),
        ],
        out_specs=pl.BlockSpec((tb, LANE), lambda i: (i, 0)),
        compiler_params=pltpu.CompilerParams(
            dimension_semantics=("parallel",)),
    )(x_pad, w_packed, b_packed)

    # Lane-dense slab in the kernel; extract the single real output column
    # and drop any batch padding here in the wrapper.
    return out[:B, :1]


def init_params(key):
    """Deterministic init mimicking PyTorch's default Linear init:
    U(-1/sqrt(fan_in), 1/sqrt(fan_in)) for both weight and bias."""
    params = []
    for (din, dout) in LAYER_DIMS:
        key, kw, kb = jax.random.split(key, 3)
        bound = 1.0 / jnp.sqrt(jnp.float32(din))
        # PyTorch stores weight as (out, in); we keep (in, out) for x @ W.
        w = jax.random.uniform(kw, (din, dout), jnp.float32, -bound, bound)
        b = jax.random.uniform(kb, (dout,), jnp.float32, -bound, bound)
        params += [w, b]
    return params


if __name__ == "__main__":
    key = jax.random.PRNGKey(0)
    key, kx = jax.random.split(key)

    B = 256  # batch; tb gets capped to 128 -> grid of 2 parallel steps
    x = jax.random.normal(kx, (B, 14), dtype=jnp.float32)
    params = init_params(key)
    w_packed, b_packed = pack_params(params)

    out = mlp_forward(x, w_packed, b_packed, tb=512)
    out = jax.block_until_ready(out)

    # Pure-JAX reference for a sanity check.
    h = x
    for i in range(NUM_LAYERS):
        h = h @ params[2 * i] + params[2 * i + 1][None, :]
        h = jnp.maximum(h, 0.0) if i < NUM_LAYERS - 1 else jax.nn.sigmoid(h)

    assert out.shape == (B, 1)
    assert jnp.allclose(out, h, atol=1e-5, rtol=1e-5)

    print("KERNEL_OK")
</pallas_src>

<mosaic_0001>
module attributes {stable_mosaic.version = 11 : i64} {
  func.func @mlp_kernel(%arg0: i32, %arg1: memref<128x128xf32, #tpu.memory_space<vmem>>, %arg2: memref<11x128x128xf32, #tpu.memory_space<vmem>>, %arg3: memref<11x1x128xf32, #tpu.memory_space<vmem>>, %arg4: memref<128x128xf32, #tpu.memory_space<vmem>>) attributes {dimension_semantics = [#tpu.dimension_semantics<parallel>], iteration_bounds = array<i64: 2>, scalar_prefetch = 0 : i64, scratch_operands = 0 : i64, tpu.core_type = #tpu.core_type<tc>, window_params = [{transform_indices = @transform_0, window_bounds = array<i64: 128, 128>}, {pipeline_mode = #tpu.pipeline_mode<synchronous>, transform_indices = @transform_1, window_bounds = array<i64: 11, 128, 128>}, {pipeline_mode = #tpu.pipeline_mode<synchronous>, transform_indices = @transform_2, window_bounds = array<i64: 11, 1, 128>}, {transform_indices = @transform_3, window_bounds = array<i64: 128, 128>}]} {
    %c0 = arith.constant 0 : index
    %c0_0 = arith.constant 0 : index
    %0 = vector.load %arg1[%c0, %c0_0] : memref<128x128xf32, #tpu.memory_space<vmem>>, vector<128x128xf32>
    %c0_1 = arith.constant 0 : index
    %c0_2 = arith.constant 0 : index
    %c0_3 = arith.constant 0 : index
    %1 = vector.load %arg2[%c0_1, %c0_2, %c0_3] : memref<11x128x128xf32, #tpu.memory_space<vmem>>, vector<1x128x128xf32>
    %2 = vector.shape_cast %1 : vector<1x128x128xf32> to vector<128x128xf32>
    %c0_4 = arith.constant 0 : index
    %c0_5 = arith.constant 0 : index
    %c0_6 = arith.constant 0 : index
    %3 = vector.load %arg3[%c0_4, %c0_5, %c0_6] : memref<11x1x128xf32, #tpu.memory_space<vmem>>, vector<1x1x128xf32>
    %4 = vector.shape_cast %3 : vector<1x1x128xf32> to vector<1x128xf32>
    %cst = arith.constant dense<0.000000e+00> : vector<128x128xf32>
    %5 = tpu.matmul %0, %2, %cst {dimension_numbers = #tpu.dot_dimension_numbers<[1], [0], [0], [1], [0, 0, 1, 1], [], []>} : vector<128x128xf32>, vector<128x128xf32>, vector<128x128xf32> -> vector<128x128xf32>
    %6 = vector.broadcast %4 : vector<1x128xf32> to vector<128x128xf32>
    %7 = arith.addf %5, %6 : vector<128x128xf32>
    %cst_7 = arith.constant 0.000000e+00 : f32
    %8 = vector.broadcast %cst_7 : f32 to vector<128x128xf32>
    %9 = arith.maximumf %7, %8 : vector<128x128xf32>
    %c1 = arith.constant 1 : index
    %c0_8 = arith.constant 0 : index
    %c0_9 = arith.constant 0 : index
    %10 = vector.load %arg2[%c1, %c0_8, %c0_9] : memref<11x128x128xf32, #tpu.memory_space<vmem>>, vector<1x128x128xf32>
    %11 = vector.shape_cast %10 : vector<1x128x128xf32> to vector<128x128xf32>
    %c1_10 = arith.constant 1 : index
    %c0_11 = arith.constant 0 : index
    %c0_12 = arith.constant 0 : index
    %12 = vector.load %arg3[%c1_10, %c0_11, %c0_12] : memref<11x1x128xf32, #tpu.memory_space<vmem>>, vector<1x1x128xf32>
    %13 = vector.shape_cast %12 : vector<1x1x128xf32> to vector<1x128xf32>
    %cst_13 = arith.constant dense<0.000000e+00> : vector<128x128xf32>
    %14 = tpu.matmul %9, %11, %cst_13 {dimension_numbers = #tpu.dot_dimension_numbers<[1], [0], [0], [1], [0, 0, 1, 1], [], []>} : vector<128x128xf32>, vector<128x128xf32>, vector<128x128xf32> -> vector<128x128xf32>
    %15 = vector.broadcast %13 : vector<1x128xf32> to vector<128x128xf32>
    %16 = arith.addf %14, %15 : vector<128x128xf32>
    %cst_14 = arith.constant 0.000000e+00 : f32
    %17 = vector.broadcast %cst_14 : f32 to vector<128x128xf32>
    %18 = arith.maximumf %16, %17 : vector<128x128xf32>
    %c2 = arith.constant 2 : index
    %c0_15 = arith.constant 0 : index
    %c0_16 = arith.constant 0 : index
    %19 = vector.load %arg2[%c2, %c0_15, %c0_16] : memref<11x128x128xf32, #tpu.memory_space<vmem>>, vector<1x128x128xf32>
    %20 = vector.shape_cast %19 : vector<1x128x128xf32> to vector<128x128xf32>
    %c2_17 = arith.constant 2 : index
    %c0_18 = arith.constant 0 : index
    %c0_19 = arith.constant 0 : index
    %21 = vector.load %arg3[%c2_17, %c0_18, %c0_19] : memref<11x1x128xf32, #tpu.memory_space<vmem>>, vector<1x1x128xf32>
    %22 = vector.shape_cast %21 : vector<1x1x128xf32> to vector<1x128xf32>
    %cst_20 = arith.constant dense<0.000000e+00> : vector<128x128xf32>
    %23 = tpu.matmul %18, %20, %cst_20 {dimension_numbers = #tpu.dot_dimension_numbers<[1], [0], [0], [1], [0, 0, 1, 1], [], []>} : vector<128x128xf32>, vector<128x128xf32>, vector<128x128xf32> -> vector<128x128xf32>
    %24 = vector.broadcast %22 : vector<1x128xf32> to vector<128x128xf32>
    %25 = arith.addf %23, %24 : vector<128x128xf32>
    %cst_21 = arith.constant 0.000000e+00 : f32
    %26 = vector.broadcast %cst_21 : f32 to vector<128x128xf32>
    %27 = arith.maximumf %25, %26 : vector<128x128xf32>
    %c3 = arith.constant 3 : index
    %c0_22 = arith.constant 0 : index
    %c0_23 = arith.constant 0 : index
    %28 = vector.load %arg2[%c3, %c0_22, %c0_23] : memref<11x128x128xf32, #tpu.memory_space<vmem>>, vector<1x128x128xf32>
    %29 = vector.shape_cast %28 : vector<1x128x128xf32> to vector<128x128xf32>
    %c3_24 = arith.constant 3 : index
    %c0_25 = arith.constant 0 : index
    %c0_26 = arith.constant 0 : index
    %30 = vector.load %arg3[%c3_24, %c0_25, %c0_26] : memref<11x1x128xf32, #tpu.memory_space<vmem>>, vector<1x1x128xf32>
    %31 = vector.shape_cast %30 : vector<1x1x128xf32> to vector<1x128xf32>
    %cst_27 = arith.constant dense<0.000000e+00> : vector<128x128xf32>
    %32 = tpu.matmul %27, %29, %cst_27 {dimension_numbers = #tpu.dot_dimension_numbers<[1], [0], [0], [1], [0, 0, 1, 1], [], []>} : vector<128x128xf32>, vector<128x128xf32>, vector<128x128xf32> -> vector<128x128xf32>
    %33 = vector.broadcast %31 : vector<1x128xf32> to vector<128x128xf32>
    %34 = arith.addf %32, %33 : vector<128x128xf32>
    %cst_28 = arith.constant 0.000000e+00 : f32
    %35 = vector.broadcast %cst_28 : f32 to vector<128x128xf32>
    %36 = arith.maximumf %34, %35 : vector<128x128xf32>
    %c4 = arith.constant 4 : index
    %c0_29 = arith.constant 0 : index
    %c0_30 = arith.constant 0 : index
    %37 = vector.load %arg2[%c4, %c0_29, %c0_30] : memref<11x128x128xf32, #tpu.memory_space<vmem>>, vector<1x128x128xf32>
    %38 = vector.shape_cast %37 : vector<1x128x128xf32> to vector<128x128xf32>
    %c4_31 = arith.constant 4 : index
    %c0_32 = arith.constant 0 : index
    %c0_33 = arith.constant 0 : index
    %39 = vector.load %arg3[%c4_31, %c0_32, %c0_33] : memref<11x1x128xf32, #tpu.memory_space<vmem>>, vector<1x1x128xf32>
    %40 = vector.shape_cast %39 : vector<1x1x128xf32> to vector<1x128xf32>
    %cst_34 = arith.constant dense<0.000000e+00> : vector<128x128xf32>
    %41 = tpu.matmul %36, %38, %cst_34 {dimension_numbers = #tpu.dot_dimension_numbers<[1], [0], [0], [1], [0, 0, 1, 1], [], []>} : vector<128x128xf32>, vector<128x128xf32>, vector<128x128xf32> -> vector<128x128xf32>
    %42 = vector.broadcast %40 : vector<1x128xf32> to vector<128x128xf32>
    %43 = arith.addf %41, %42 : vector<128x128xf32>
    %cst_35 = arith.constant 0.000000e+00 : f32
    %44 = vector.broadcast %cst_35 : f32 to vector<128x128xf32>
    %45 = arith.maximumf %43, %44 : vector<128x128xf32>
    %c5 = arith.constant 5 : index
    %c0_36 = arith.constant 0 : index
    %c0_37 = arith.constant 0 : index
    %46 = vector.load %arg2[%c5, %c0_36, %c0_37] : memref<11x128x128xf32, #tpu.memory_space<vmem>>, vector<1x128x128xf32>
    %47 = vector.shape_cast %46 : vector<1x128x128xf32> to vector<128x128xf32>
    %c5_38 = arith.constant 5 : index
    %c0_39 = arith.constant 0 : index
    %c0_40 = arith.constant 0 : index
    %48 = vector.load %arg3[%c5_38, %c0_39, %c0_40] : memref<11x1x128xf32, #tpu.memory_space<vmem>>, vector<1x1x128xf32>
    %49 = vector.shape_cast %48 : vector<1x1x128xf32> to vector<1x128xf32>
    %cst_41 = arith.constant dense<0.000000e+00> : vector<128x128xf32>
    %50 = tpu.matmul %45, %47, %cst_41 {dimension_numbers = #tpu.dot_dimension_numbers<[1], [0], [0], [1], [0, 0, 1, 1], [], []>} : vector<128x128xf32>, vector<128x128xf32>, vector<128x128xf32> -> vector<128x128xf32>
    %51 = vector.broadcast %49 : vector<1x128xf32> to vector<128x128xf32>
    %52 = arith.addf %50, %51 : vector<128x128xf32>
    %cst_42 = arith.constant 0.000000e+00 : f32
    %53 = vector.broadcast %cst_42 : f32 to vector<128x128xf32>
    %54 = arith.maximumf %52, %53 : vector<128x128xf32>
    %c6 = arith.constant 6 : index
    %c0_43 = arith.constant 0 : index
    %c0_44 = arith.constant 0 : index
    %55 = vector.load %arg2[%c6, %c0_43, %c0_44] : memref<11x128x128xf32, #tpu.memory_space<vmem>>, vector<1x128x128xf32>
    %56 = vector.shape_cast %55 : vector<1x128x128xf32> to vector<128x128xf32>
    %c6_45 = arith.constant 6 : index
    %c0_46 = arith.constant 0 : index
    %c0_47 = arith.constant 0 : index
    %57 = vector.load %arg3[%c6_45, %c0_46, %c0_47] : memref<11x1x128xf32, #tpu.memory_space<vmem>>, vector<1x1x128xf32>
    %58 = vector.shape_cast %57 : vector<1x1x128xf32> to vector<1x128xf32>
    %cst_48 = arith.constant dense<0.000000e+00> : vector<128x128xf32>
    %59 = tpu.matmul %54, %56, %cst_48 {dimension_numbers = #tpu.dot_dimension_numbers<[1], [0], [0], [1], [0, 0, 1, 1], [], []>} : vector<128x128xf32>, vector<128x128xf32>, vector<128x128xf32> -> vector<128x128xf32>
    %60 = vector.broadcast %58 : vector<1x128xf32> to vector<128x128xf32>
    %61 = arith.addf %59, %60 : vector<128x128xf32>
    %cst_49 = arith.constant 0.000000e+00 : f32
    %62 = vector.broadcast %cst_49 : f32 to vector<128x128xf32>
    %63 = arith.maximumf %61, %62 : vector<128x128xf32>
    %c7 = arith.constant 7 : index
    %c0_50 = arith.constant 0 : index
    %c0_51 = arith.constant 0 : index
    %64 = vector.load %arg2[%c7, %c0_50, %c0_51] : memref<11x128x128xf32, #tpu.memory_space<vmem>>, vector<1x128x128xf32>
    %65 = vector.shape_cast %64 : vector<1x128x128xf32> to vector<128x128xf32>
    %c7_52 = arith.constant 7 : index
    %c0_53 = arith.constant 0 : index
    %c0_54 = arith.constant 0 : index
    %66 = vector.load %arg3[%c7_52, %c0_53, %c0_54] : memref<11x1x128xf32, #tpu.memory_space<vmem>>, vector<1x1x128xf32>
    %67 = vector.shape_cast %66 : vector<1x1x128xf32> to vector<1x128xf32>
    %cst_55 = arith.constant dense<0.000000e+00> : vector<128x128xf32>
    %68 = tpu.matmul %63, %65, %cst_55 {dimension_numbers = #tpu.dot_dimension_numbers<[1], [0], [0], [1], [0, 0, 1, 1], [], []>} : vector<128x128xf32>, vector<128x128xf32>, vector<128x128xf32> -> vector<128x128xf32>
    %69 = vector.broadcast %67 : vector<1x128xf32> to vector<128x128xf32>
    %70 = arith.addf %68, %69 : vector<128x128xf32>
    %cst_56 = arith.constant 0.000000e+00 : f32
    %71 = vector.broadcast %cst_56 : f32 to vector<128x128xf32>
    %72 = arith.maximumf %70, %71 : vector<128x128xf32>
    %c8 = arith.constant 8 : index
    %c0_57 = arith.constant 0 : index
    %c0_58 = arith.constant 0 : index
    %73 = vector.load %arg2[%c8, %c0_57, %c0_58] : memref<11x128x128xf32, #tpu.memory_space<vmem>>, vector<1x128x128xf32>
    %74 = vector.shape_cast %73 : vector<1x128x128xf32> to vector<128x128xf32>
    %c8_59 = arith.constant 8 : index
    %c0_60 = arith.constant 0 : index
    %c0_61 = arith.constant 0 : index
    %75 = vector.load %arg3[%c8_59, %c0_60, %c0_61] : memref<11x1x128xf32, #tpu.memory_space<vmem>>, vector<1x1x128xf32>
    %76 = vector.shape_cast %75 : vector<1x1x128xf32> to vector<1x128xf32>
    %cst_62 = arith.constant dense<0.000000e+00> : vector<128x128xf32>
    %77 = tpu.matmul %72, %74, %cst_62 {dimension_numbers = #tpu.dot_dimension_numbers<[1], [0], [0], [1], [0, 0, 1, 1], [], []>} : vector<128x128xf32>, vector<128x128xf32>, vector<128x128xf32> -> vector<128x128xf32>
    %78 = vector.broadcast %76 : vector<1x128xf32> to vector<128x128xf32>
    %79 = arith.addf %77, %78 : vector<128x128xf32>
    %cst_63 = arith.constant 0.000000e+00 : f32
    %80 = vector.broadcast %cst_63 : f32 to vector<128x128xf32>
    %81 = arith.maximumf %79, %80 : vector<128x128xf32>
    %c9 = arith.constant 9 : index
    %c0_64 = arith.constant 0 : index
    %c0_65 = arith.constant 0 : index
    %82 = vector.load %arg2[%c9, %c0_64, %c0_65] : memref<11x128x128xf32, #tpu.memory_space<vmem>>, vector<1x128x128xf32>
    %83 = vector.shape_cast %82 : vector<1x128x128xf32> to vector<128x128xf32>
    %c9_66 = arith.constant 9 : index
    %c0_67 = arith.constant 0 : index
    %c0_68 = arith.constant 0 : index
    %84 = vector.load %arg3[%c9_66, %c0_67, %c0_68] : memref<11x1x128xf32, #tpu.memory_space<vmem>>, vector<1x1x128xf32>
    %85 = vector.shape_cast %84 : vector<1x1x128xf32> to vector<1x128xf32>
    %cst_69 = arith.constant dense<0.000000e+00> : vector<128x128xf32>
    %86 = tpu.matmul %81, %83, %cst_69 {dimension_numbers = #tpu.dot_dimension_numbers<[1], [0], [0], [1], [0, 0, 1, 1], [], []>} : vector<128x128xf32>, vector<128x128xf32>, vector<128x128xf32> -> vector<128x128xf32>
    %87 = vector.broadcast %85 : vector<1x128xf32> to vector<128x128xf32>
    %88 = arith.addf %86, %87 : vector<128x128xf32>
    %cst_70 = arith.constant 0.000000e+00 : f32
    %89 = vector.broadcast %cst_70 : f32 to vector<128x128xf32>
    %90 = arith.maximumf %88, %89 : vector<128x128xf32>
    %c10 = arith.constant 10 : index
    %c0_71 = arith.constant 0 : index
    %c0_72 = arith.constant 0 : index
    %91 = vector.load %arg2[%c10, %c0_71, %c0_72] : memref<11x128x128xf32, #tpu.memory_space<vmem>>, vector<1x128x128xf32>
    %92 = vector.shape_cast %91 : vector<1x128x128xf32> to vector<128x128xf32>
    %c10_73 = arith.constant 10 : index
    %c0_74 = arith.constant 0 : index
    %c0_75 = arith.constant 0 : index
    %93 = vector.load %arg3[%c10_73, %c0_74, %c0_75] : memref<11x1x128xf32, #tpu.memory_space<vmem>>, vector<1x1x128xf32>
    %94 = vector.shape_cast %93 : vector<1x1x128xf32> to vector<1x128xf32>
    %cst_76 = arith.constant dense<0.000000e+00> : vector<128x128xf32>
    %95 = tpu.matmul %90, %92, %cst_76 {dimension_numbers = #tpu.dot_dimension_numbers<[1], [0], [0], [1], [0, 0, 1, 1], [], []>} : vector<128x128xf32>, vector<128x128xf32>, vector<128x128xf32> -> vector<128x128xf32>
    %96 = vector.broadcast %94 : vector<1x128xf32> to vector<128x128xf32>
    %97 = arith.addf %95, %96 : vector<128x128xf32>
    %98 = arith.negf %97 : vector<128x128xf32>
    %99 = math.exp %98 : vector<128x128xf32>
    %cst_77 = arith.constant 1.000000e+00 : f32
    %100 = vector.broadcast %cst_77 : f32 to vector<128x128xf32>
    %101 = arith.addf %100, %99 : vector<128x128xf32>
    %102 = arith.divf %100, %101 : vector<128x128xf32>
    %c0_78 = arith.constant 0 : index
    %c0_79 = arith.constant 0 : index
    %103 = vector.load %arg4[%c0_78, %c0_79] : memref<128x128xf32, #tpu.memory_space<vmem>>, vector<128x128xf32>
    tpu.vector_store %arg4[%c0_78, %c0_79], %102 {strides = array<i32>} : memref<128x128xf32, #tpu.memory_space<vmem>>, vector<128x128xf32>,
    return
  }
  func.func @transform_0(%arg0: i32) -> (i32, i32) {
    %c0_i32 = arith.constant 0 : i32
    %c0_i32_0 = arith.constant 0 : i32
    return %arg0, %c0_i32 : i32, i32
  }
  func.func @transform_1(%arg0: i32) -> (i32, i32, i32) {
    %c0_i32 = arith.constant 0 : i32
    %c0_i32_0 = arith.constant 0 : i32
    %c0_i32_1 = arith.constant 0 : i32
    %c0_i32_2 = arith.constant 0 : i32
    return %c0_i32, %c0_i32_0, %c0_i32_1 : i32, i32, i32
  }
  func.func @transform_2(%arg0: i32) -> (i32, i32, i32) {
    %c0_i32 = arith.constant 0 : i32
    %c0_i32_0 = arith.constant 0 : i32
    %c0_i32_1 = arith.constant 0 : i32
    %c0_i32_2 = arith.constant 0 : i32
    return %c0_i32, %c0_i32_0, %c0_i32_1 : i32, i32, i32
  }
  func.func @transform_3(%arg0: i32) -> (i32, i32) {
    %c0_i32 = arith.constant 0 : i32
    %c0_i32_0 = arith.constant 0 : i32
    return %arg0, %c0_i32 : i32, i32
  }
}

</mosaic_0001>

<llo_original>
// kernel: tpu_custom_call.1
$region0: #{tpu_custom_call.1}
  #allocation0 [shape = 'u32[]', space=smem, size = 0x4, offset = 0x4, fixed_abs, tag = 'smem constant byte address 0x4 - core index']
  #allocation1 [shape = 'u32[72,128]{1,0:T(1,128)}', space=vmem, size = 0x9000, scoped, tag = 'internal scratch']
  %s0 = inlined_call_operand.hbm [shape: f32[256,128], index: 0, kind: input, shape index: {}]
  %s1 = inlined_call_operand.hbm [shape: f32[11,128,128], index: 1, kind: input, shape index: {}]
  %s2 = inlined_call_operand.hbm [shape: f32[11,1,128], index: 2, kind: input, shape index: {}]
  %s3 = inlined_call_operand.hbm [shape: f32[256,128], index: 3, kind: output, shape index: {}]
  %s4 = sld [smem:[#allocation0]]
  $region57: #{tpu_custom_call.1} parent=0
    _
  %s6 = ssub.s32 1, %s4
  %s7 = scalar_select 0, %s6, %s4
  $region1: #{tpu_custom_call.1} parent=0
    #allocation2 [shape = 'u8[131072]{0}', space=vmem, size = 0x20000, scoped, tag = 'input window, operand 0']
    #allocation3 [shape = 's32[2]{0}', space=sflag, size = 0x8, scoped, tag = 'scoped memory for tpu_custom_call.1']
    #allocation4 [shape = 's32[2]{0}', space=sflag, size = 0x8, scoped, tag = 'scoped memory for tpu_custom_call.1']
    #allocation5 [shape = 'u8[720896]{0}', space=vmem, size = 0xb0000, scoped, tag = 'input window, operand 1, single buffered']
    #allocation6 [shape = 's32[1]{0}', space=sflag, size = 0x4, scoped, tag = 'scoped memory for tpu_custom_call.1']
    #allocation7 [shape = 'u8[5632]{0}', space=vmem, size = 0x1800, scoped, tag = 'input window, operand 2, single buffered']
    #allocation8 [shape = 'u8[131072]{0}', space=vmem, size = 0x20000, scoped, tag = 'output window, operand 0']
    %8 = vsyncpa [#allocation3], 0
    %s9 = scalar_lea.sflag [#allocation3], 1
    %10 = vsyncpa %s9, 0
    %11 = vsyncpa [#allocation6], 0
    %12 = vsyncpa [#allocation4], 0
    %s13 = scalar_lea.sflag [#allocation4], 1
    %14 = vsyncpa %s13, 0
    loop: start=0, step=1, limit=4
    $region2: #{tpu_custom_call.1} parent=1 // loop_pre_header
      _
    $region3: #{tpu_custom_call.1} parent=1 // loop_header
      %s16 = sphi 0, %s20
      %p17 = scmp.ge.s32.totalorder %s16, 4
      %s26 = sphi 0, %s28
      %s29 = sphi 0, %s26
      %s30 = sphi 0, %s29
      %s46 = sphi 0, %s30
      %s50 = sphi 0, %s50
      %s52 = sphi 0, %s50
      %s53 = sphi 0, %s52
      %s67 = sphi 0, %s53
      %s71 = sphi 0, %s71
      %s73 = sphi 0, %s71
      %s74 = sphi 0, %s73
      %s88 = sphi 0, %s74
      %s94 = sphi 0, %s96
      %s97 = sphi 0, %s94
      %s98 = sphi 0, %s97
      %s114 = sphi 0, %s98
    $region4: #{tpu_custom_call.1} parent=1 // loop_header_branch
      %19 = sbr.rel (%p17) target = $region8
    $region5: #{tpu_custom_call.1} parent=1 // loop_body
      %s21 = ssub.s32 %s16, 1
      %s22 = ssub.s32 %s16, 2
      %s23 = sadd.s32 %s16, 1
      %s24 = ssub.s32 %s16, %s23
      %p25 = scmp.eq.s32.totalorder %s24, 0
      %s27 = sadd.s32 %s26, 1
      %s28 = scalar_select %p25, %s26, %s27
      %p31 = pneg %p25
      %p32 = scmp.eq.s32.totalorder %s16, 1
      %p33 = por %p31, %p32
      %p34 = scmp.ne.s32.totalorder %s26, %s29
      %p35 = scmp.eq.s32.totalorder %s16, 0
      %p36 = por %p34, %p35
      %p37 = scmp.ne.s32.totalorder %s26, %s29
      %p38 = scmp.eq.s32.totalorder %s21, 1
      %p39 = por %p37, %p38
      %p40 = scmp.ne.s32.totalorder %s29, %s30
      %p41 = scmp.eq.s32.totalorder %s21, 0
      %p42 = por %p40, %p41
      %p43 = scmp.ne.s32.totalorder %s29, %s30
      %p44 = scmp.eq.s32.totalorder %s22, 1
      %p45 = por %p43, %p44
      %p47 = scmp.ne.s32.totalorder %s30, %s46
      %p48 = scmp.eq.s32.totalorder %s22, 0
      %p49 = por %p47, %p48
      %s51 = sadd.s32 %s50, 1
      %p54 = scmp.eq.s32.totalorder %s16, 1
      %p55 = scmp.ne.s32.totalorder %s50, %s52
      %p56 = scmp.eq.s32.totalorder %s16, 0
      %p57 = por %p55, %p56
      %p58 = scmp.ne.s32.totalorder %s50, %s52
      %p59 = scmp.eq.s32.totalorder %s21, 1
      %p60 = por %p58, %p59
      %p61 = scmp.ne.s32.totalorder %s52, %s53
      %p62 = scmp.eq.s32.totalorder %s21, 0
      %p63 = por %p61, %p62
      %p64 = scmp.ne.s32.totalorder %s52, %s53
      %p65 = scmp.eq.s32.totalorder %s22, 1
      %p66 = por %p64, %p65
      %p68 = scmp.ne.s32.totalorder %s53, %s67
      %p69 = scmp.eq.s32.totalorder %s22, 0
      %p70 = por %p68, %p69
      %s72 = sadd.s32 %s71, 1
      %p75 = scmp.eq.s32.totalorder %s16, 1
      %p76 = scmp.ne.s32.totalorder %s71, %s73
      %p77 = scmp.eq.s32.totalorder %s16, 0
      %p78 = por %p76, %p77
      %p79 = scmp.ne.s32.totalorder %s71, %s73
      %p80 = scmp.eq.s32.totalorder %s21, 1
      %p81 = por %p79, %p80
      %p82 = scmp.ne.s32.totalorder %s73, %s74
      %p83 = scmp.eq.s32.totalorder %s21, 0
      %p84 = por %p82, %p83
      %p85 = scmp.ne.s32.totalorder %s73, %s74
      %p86 = scmp.eq.s32.totalorder %s22, 1
      %p87 = por %p85, %p86
      %p89 = scmp.ne.s32.totalorder %s74, %s88
      %p90 = scmp.eq.s32.totalorder %s22, 0
      %p91 = por %p89, %p90
      %s92 = ssub.s32 %s16, %s23
      %p93 = scmp.eq.s32.totalorder %s92, 0
      %s95 = sadd.s32 %s94, 1
      %s96 = scalar_select %p93, %s94, %s95
      %p99 = pneg %p93
      %p100 = scmp.eq.s32.totalorder %s16, 1
      %p101 = por %p99, %p100
      %p102 = scmp.ne.s32.totalorder %s94, %s97
      %p103 = scmp.eq.s32.totalorder %s16, 0
      %p104 = por %p102, %p103
      %p105 = scmp.ne.s32.totalorder %s94, %s97
      %p106 = scmp.eq.s32.totalorder %s21, 1
      %p107 = por %p105, %p106
      %p108 = scmp.ne.s32.totalorder %s97, %s98
      %p109 = scmp.eq.s32.totalorder %s21, 0
      %p110 = por %p108, %p109
      %p111 = scmp.ne.s32.totalorder %s97, %s98
      %p112 = scmp.eq.s32.totalorder %s22, 1
      %p113 = por %p111, %p112
      %p115 = scmp.ne.s32.totalorder %s98, %s114
      %p116 = scmp.eq.s32.totalorder %s22, 0
      %p117 = por %p115, %p116
      %p118 = scmp.le.s32.totalorder 1, %s16
      %p119 = scmp.lt.s32.totalorder %s16, 3
      %p120 = pnand %p118, %p119
      %p121 = pneg %p120
      // Predicated region
      $region9: #{tpu_custom_call.1} parent=5 // pred_check
        _
      $region10: #{tpu_custom_call.1} parent=5 // pred_check_branch
        %123 = sbr.rel (%p120) target = $region12
      $region11: #{tpu_custom_call.1} parent=5 // pred_region
        %s124 = ssub.s32 %s16, 1
        // Predicated region
        $region13: #{tpu_custom_call.1} parent=11 // pred_check
          %p125 = pneg %p63
        $region14: #{tpu_custom_call.1} parent=11 // pred_check_branch
          %127 = sbr.rel (%p125) target = $region16
        $region15: #{tpu_custom_call.1} parent=11 // pred_region
          %129 = vsyncadd [#allocation6], 0
          %s130 = sshll.u32 %s1, 4
          %s131 = int_to_ptr.hbm [resolvable:$true] %s130
          %s132 = sshll.u32 [#allocation5], 4
          %s133 = int_to_ptr.vmem [resolvable:$true] %s132
          %138 = dma.hbm_to_vmem [thread:$0]  %s131, 22528, %s133, [#allocation6], 128, 128, 8
        $region16: #{tpu_custom_call.1} parent=11 // pred_fallthru
          _
        // Predicated region
        $region17: #{tpu_custom_call.1} parent=11 // pred_check
          %p139 = pneg %p84
        $region18: #{tpu_custom_call.1} parent=11 // pred_check_branch
          %141 = sbr.rel (%p139) target = $region20
        $region19: #{tpu_custom_call.1} parent=11 // pred_region
          %143 = vsyncadd [#allocation6], 0
          %s144 = sshll.u32 %s2, 4
          %s145 = int_to_ptr.hbm [resolvable:$true] %s144
          %s146 = sshll.u32 [#allocation7], 4
          %s147 = int_to_ptr.vmem [resolvable:$true] %s146
          %152 = dma.hbm_to_vmem [thread:$0]  %s145, 176, %s147, [#allocation6], 16, 16, 1
        $region20: #{tpu_custom_call.1} parent=11 // pred_fallthru
          _
      $region12: #{tpu_custom_call.1} parent=5 // pred_fallthru
        _
      %p153 = scmp.lt.s32.totalorder %s16, 2
      // Predicated region
      $region21: #{tpu_custom_call.1} parent=5 // pred_check
        %p154 = pneg %p153
      $region22: #{tpu_custom_call.1} parent=5 // pred_check_branch
        %156 = sbr.rel (%p154) target = $region24
      $region23: #{tpu_custom_call.1} parent=5 // pred_region
        // Predicated region
        $region25: #{tpu_custom_call.1} parent=23 // pred_check
          %p157 = pneg %p36
        $region26: #{tpu_custom_call.1} parent=23 // pred_check_branch
          %159 = sbr.rel (%p157) target = $region28
        $region27: #{tpu_custom_call.1} parent=23 // pred_region
          %s160 = sand.u32 %s26, 1
          %s161 = scalar_lea.sflag [#allocation3], %s160
          %s162 = sand.u32 %s26, 1
          %s163 = smul.addr %s162, 128
          %s164 = scalar_lea.vmem [#allocation2], %s163
          %s165 = smul.u32 16, %s16
          %167 = vsyncadd %s161, 0
          %s168 = smul.addr %s165, 8
          %s169 = scalar_lea.hbm %s0, %s168
          %s170 = sshll.u32 %s169, 4
          %s171 = int_to_ptr.hbm [resolvable:$true] %s170
          %s172 = sshll.u32 %s164, 4
          %s173 = int_to_ptr.vmem [resolvable:$true] %s172
          %178 = dma.hbm_to_vmem [thread:$0]  %s171, 2048, %s173, %s161, 128, 128, 8
        $region28: #{tpu_custom_call.1} parent=23 // pred_fallthru
          _
      $region24: #{tpu_custom_call.1} parent=5 // pred_fallthru
        _
      %p179 = scmp.le.s32.totalorder 1, %s16
      %p180 = scmp.lt.s32.totalorder %s16, 3
      %p181 = pnand %p179, %p180
      %p182 = pneg %p181
      // Predicated region
      $region29: #{tpu_custom_call.1} parent=5 // pred_check
        _
      $region30: #{tpu_custom_call.1} parent=5 // pred_check_branch
        %184 = sbr.rel (%p181) target = $region32
      $region31: #{tpu_custom_call.1} parent=5 // pred_region
        %s185 = ssub.s32 %s16, 1
        %s186 = sand.u32 %s29, 1
        %s187 = scalar_lea.sflag [#allocation3], %s186
        %s188 = sand.u32 %s29, 1
        %s189 = smul.addr %s188, 128
        %s190 = scalar_lea.vmem [#allocation2], %s189
        // Predicated region
        $region33: #{tpu_custom_call.1} parent=31 // pred_check
          %p191 = pneg %p42
        $region34: #{tpu_custom_call.1} parent=31 // pred_check_branch
          %193 = sbr.rel (%p191) target = $region36
        $region35: #{tpu_custom_call.1} parent=31 // pred_region
          %195 = dma.done %s187, 2048
        $region36: #{tpu_custom_call.1} parent=31 // pred_fallthru
          _
        // Predicated region
        $region37: #{tpu_custom_call.1} parent=31 // pred_check
          %p196 = pneg %p63
        $region38: #{tpu_custom_call.1} parent=31 // pred_check_branch
          %198 = sbr.rel (%p196) target = $region40
        $region39: #{tpu_custom_call.1} parent=31 // pred_region
          %200 = dma.done [#allocation6], 22528
        $region40: #{tpu_custom_call.1} parent=31 // pred_fallthru
          _
        // Predicated region
        $region41: #{tpu_custom_call.1} parent=31 // pred_check
          %p201 = pneg %p84
        $region42: #{tpu_custom_call.1} parent=31 // pred_check_branch
          %203 = sbr.rel (%p201) target = $region44
        $region43: #{tpu_custom_call.1} parent=31 // pred_region
          %205 = dma.done [#allocation6], 176
        $region44: #{tpu_custom_call.1} parent=31 // pred_fallthru
          _
        %s206 = sand.u32 %s29, 1
        %s207 = scalar_lea.sflag [#allocation3], %s206
        %s208 = sand.u32 %s29, 1
        %s209 = smul.addr %s208, 128
        %s210 = scalar_lea.vmem [#allocation2], %s209
        %p211 = pneg %p42
        %p212 = pneg %p39
        %p213 = pneg %p63
        %p214 = pneg %p60
        %p215 = pneg %p84
        %p216 = pneg %p81
        %p217 = pneg %p110
        %p218 = pneg %p107
        %s219 = sand.u32 %s97, 1
        %s220 = scalar_lea.sflag [#allocation4], %s219
        %s221 = sand.u32 %s97, 1
        %s222 = smul.addr %s221, 128
        %s223 = scalar_lea.vmem [#allocation8], %s222
        %s224 = smul.u32 16, %s21
        %s225 = smul.u32 16, %s21
        %v226 = vld [vmem:[%s190] sm:$0xff]
        %v227 = vld [vmem:[%s190 + $0x8] sm:$0xff]
        %v228 = vld [vmem:[%s190 + $0x10] sm:$0xff]
        %v229 = vld [vmem:[%s190 + $0x18] sm:$0xff]
        %v230 = vld [vmem:[%s190 + $0x20] sm:$0xff]
        %v231 = vld [vmem:[%s190 + $0x28] sm:$0xff]
        %v232 = vld [vmem:[%s190 + $0x30] sm:$0xff]
        %v233 = vld [vmem:[%s190 + $0x38] sm:$0xff]
        %v234 = vld [vmem:[%s190 + $0x40] sm:$0xff]
        %v235 = vld [vmem:[%s190 + $0x48] sm:$0xff]
        %v236 = vld [vmem:[%s190 + $0x50] sm:$0xff]
        %v237 = vld [vmem:[%s190 + $0x58] sm:$0xff]
        %v238 = vld [vmem:[%s190 + $0x60] sm:$0xff]
        %v239 = vld [vmem:[%s190 + $0x68] sm:$0xff]
        %v240 = vld [vmem:[%s190 + $0x70] sm:$0xff]
        %v241 = vld [vmem:[%s190 + $0x78] sm:$0xff]
        %v242 = vld [vmem:[#allocation5] sm:$0xff]
        %v243 = vld [vmem:[#allocation5 + $0x8] sm:$0xff]
        %v244 = vld [vmem:[#allocation5 + $0x10] sm:$0xff]
        %v245 = vld [vmem:[#allocation5 + $0x18] sm:$0xff]
        %v246 = vld [vmem:[#allocation5 + $0x20] sm:$0xff]
        %v247 = vld [vmem:[#allocation5 + $0x28] sm:$0xff]
        %v248 = vld [vmem:[#allocation5 + $0x30] sm:$0xff]
        %v249 = vld [vmem:[#allocation5 + $0x38] sm:$0xff]
        %v250 = vld [vmem:[#allocation5 + $0x40] sm:$0xff]
        %v251 = vld [vmem:[#allocation5 + $0x48] sm:$0xff]
        %v252 = vld [vmem:[#allocation5 + $0x50] sm:$0xff]
        %v253 = vld [vmem:[#allocation5 + $0x58] sm:$0xff]
        %v254 = vld [vmem:[#allocation5 + $0x60] sm:$0xff]
        %v255 = vld [vmem:[#allocation5 + $0x68] sm:$0xff]
        %v256 = vld [vmem:[#allocation5 + $0x70] sm:$0xff]
        %v257 = vld [vmem:[#allocation5 + $0x78] sm:$0xff]
        %v258 = vld [vmem:[#allocation7] sm:$0x1]
        %v260 = vperm.slane %v258, 0
        %262 = vmatpush.msra.mxu0 %v257
        %263 = vmatpush.msra.mxu0 %v256
        %264 = vmatpush.msra.mxu0 %v255
        %265 = vmatpush.msra.mxu0 %v254
        %266 = vmatpush.msra.mxu0 %v253
        %267 = vmatpush.msra.mxu0 %v252
        %268 = vmatpush.msra.mxu0 %v251
        %269 = vmatpush.msra.mxu0 %v250
        %270 = vmatpush.msra.mxu0 %v249
        %271 = vmatpush.msra.mxu0 %v248
        %272 = vmatpush.msra.mxu0 %v247
        %273 = vmatpush.msra.mxu0 %v246
        %274 = vmatpush.msra.mxu0 %v245
        %275 = vmatpush.msra.mxu0 %v244
        %276 = vmatpush.msra.mxu0 %v243
        %277 = vmatpush.msra.mxu0 %v242
        %278 = vmatmul.f32.gmra.mxu0 %v226
        %v279 = vpop.f32.mrf.mxu0
        %v280 = vadd.f32 %v260, %v279
        %281 = vmatmul.f32.gmra.mxu0 %v227
        %v282 = vpop.f32.mrf.mxu0
        %v283 = vadd.f32 %v260, %v282
        %284 = vmatmul.f32.gmra.mxu0 %v228
        %v285 = vpop.f32.mrf.mxu0
        %v286 = vadd.f32 %v260, %v285
        %287 = vmatmul.f32.gmra.mxu0 %v229
        %v288 = vpop.f32.mrf.mxu0
        %v289 = vadd.f32 %v260, %v288
        %290 = vmatmul.f32.gmra.mxu0 %v230
        %v291 = vpop.f32.mrf.mxu0
        %v292 = vadd.f32 %v260, %v291
        %293 = vmatmul.f32.gmra.mxu0 %v231
        %v294 = vpop.f32.mrf.mxu0
        %v295 = vadd.f32 %v260, %v294
        %296 = vmatmul.f32.gmra.mxu0 %v232
        %v297 = vpop.f32.mrf.mxu0
        %v298 = vadd.f32 %v260, %v297
        %299 = vmatmul.f32.gmra.mxu0 %v233
        %v300 = vpop.f32.mrf.mxu0
        %v301 = vadd.f32 %v260, %v300
        %302 = vmatmul.f32.gmra.mxu0 %v234
        %v303 = vpop.f32.mrf.mxu0
        %v304 = vadd.f32 %v260, %v303
        %305 = vmatmul.f32.gmra.mxu0 %v235
        %v306 = vpop.f32.mrf.mxu0
        %v307 = vadd.f32 %v260, %v306
        %308 = vmatmul.f32.gmra.mxu0 %v236
        %v309 = vpop.f32.mrf.mxu0
        %v310 = vadd.f32 %v260, %v309
        %311 = vmatmul.f32.gmra.mxu0 %v237
        %v312 = vpop.f32.mrf.mxu0
        %v313 = vadd.f32 %v260, %v312
        %314 = vmatmul.f32.gmra.mxu0 %v238
        %v315 = vpop.f32.mrf.mxu0
        %v316 = vadd.f32 %v260, %v315
        %317 = vmatmul.f32.gmra.mxu0 %v239
        %v318 = vpop.f32.mrf.mxu0
        %v319 = vadd.f32 %v260, %v318
        %320 = vmatmul.f32.gmra.mxu0 %v240
        %v321 = vpop.f32.mrf.mxu0
        %v322 = vadd.f32 %v260, %v321
        %323 = vmatmul.f32.gmra.mxu0 %v241
        %v324 = vpop.f32.mrf.mxu0
        %v325 = vadd.f32 %v260, %v324
        %326 = vdwg.mxu0
        %v327 = vmax.f32 %v280, 0.0
        %v328 = vmax.f32 %v283, 0.0
        %v329 = vmax.f32 %v286, 0.0
        %v330 = vmax.f32 %v289, 0.0
        %v331 = vmax.f32 %v292, 0.0
        %v332 = vmax.f32 %v295, 0.0
        %v333 = vmax.f32 %v298, 0.0
        %v334 = vmax.f32 %v301, 0.0
        %v335 = vmax.f32 %v304, 0.0
        %v336 = vmax.f32 %v307, 0.0
        %v337 = vmax.f32 %v310, 0.0
        %v338 = vmax.f32 %v313, 0.0
        %v339 = vmax.f32 %v316, 0.0
        %v340 = vmax.f32 %v319, 0.0
        %v341 = vmax.f32 %v322, 0.0
        %v342 = vmax.f32 %v325, 0.0
        %s343 = scalar_lea.vmem [#allocation5], 128
        %v344 = vld [vmem:[%s343] sm:$0xff]
        %v345 = vld [vmem:[%s343 + $0x8] sm:$0xff]
        %v346 = vld [vmem:[%s343 + $0x10] sm:$0xff]
        %v347 = vld [vmem:[%s343 + $0x18] sm:$0xff]
        %v348 = vld [vmem:[%s343 + $0x20] sm:$0xff]
        %v349 = vld [vmem:[%s343 + $0x28] sm:$0xff]
        %v350 = vld [vmem:[%s343 + $0x30] sm:$0xff]
        %v351 = vld [vmem:[%s343 + $0x38] sm:$0xff]
        %v352 = vld [vmem:[%s343 + $0x40] sm:$0xff]
        %v353 = vld [vmem:[%s343 + $0x48] sm:$0xff]
        %v354 = vld [vmem:[%s343 + $0x50] sm:$0xff]
        %v355 = vld [vmem:[%s343 + $0x58] sm:$0xff]
        %v356 = vld [vmem:[%s343 + $0x60] sm:$0xff]
        %v357 = vld [vmem:[%s343 + $0x68] sm:$0xff]
        %v358 = vld [vmem:[%s343 + $0x70] sm:$0xff]
        %v359 = vld [vmem:[%s343 + $0x78] sm:$0xff]
        %s360 = scalar_lea.vmem [#allocation7], 1
        %v361 = vld [vmem:[%s360] sm:$0x1]
        %v363 = vperm.slane %v361, 0
        %365 = vmatpush.msra.mxu0 %v359
        %366 = vmatpush.msra.mxu0 %v358
        %367 = vmatpush.msra.mxu0 %v357
        %368 = vmatpush.msra.mxu0 %v356
        %369 = vmatpush.msra.mxu0 %v355
        %370 = vmatpush.msra.mxu0 %v354
        %371 = vmatpush.msra.mxu0 %v353
        %372 = vmatpush.msra.mxu0 %v352
        %373 = vmatpush.msra.mxu0 %v351
        %374 = vmatpush.msra.mxu0 %v350
        %375 = vmatpush.msra.mxu0 %v349
        %376 = vmatpush.msra.mxu0 %v348
        %377 = vmatpush.msra.mxu0 %v347
        %378 = vmatpush.msra.mxu0 %v346
        %379 = vmatpush.msra.mxu0 %v345
        %380 = vmatpush.msra.mxu0 %v344
        %381 = vmatmul.f32.gmra.mxu0 %v327
        %v382 = vpop.f32.mrf.mxu0
        %v383 = vadd.f32 %v363, %v382
        %384 = vmatmul.f32.gmra.mxu0 %v328
        %v385 = vpop.f32.mrf.mxu0
        %v386 = vadd.f32 %v363, %v385
        %387 = vmatmul.f32.gmra.mxu0 %v329
        %v388 = vpop.f32.mrf.mxu0
        %v389 = vadd.f32 %v363, %v388
        %390 = vmatmul.f32.gmra.mxu0 %v330
        %v391 = vpop.f32.mrf.mxu0
        %v392 = vadd.f32 %v363, %v391
        %393 = vmatmul.f32.gmra.mxu0 %v331
        %v394 = vpop.f32.mrf.mxu0
        %v395 = vadd.f32 %v363, %v394
        %396 = vmatmul.f32.gmra.mxu0 %v332
        %v397 = vpop.f32.mrf.mxu0
        %v398 = vadd.f32 %v363, %v397
        %399 = vmatmul.f32.gmra.mxu0 %v333
        %v400 = vpop.f32.mrf.mxu0
        %v401 = vadd.f32 %v363, %v400
        %402 = vmatmul.f32.gmra.mxu0 %v334
        %v403 = vpop.f32.mrf.mxu0
        %v404 = vadd.f32 %v363, %v403
        %405 = vmatmul.f32.gmra.mxu0 %v335
        %v406 = vpop.f32.mrf.mxu0
        %v407 = vadd.f32 %v363, %v406
        %408 = vmatmul.f32.gmra.mxu0 %v336
        %v409 = vpop.f32.mrf.mxu0
        %v410 = vadd.f32 %v363, %v409
        %411 = vmatmul.f32.gmra.mxu0 %v337
        %v412 = vpop.f32.mrf.mxu0
        %v413 = vadd.f32 %v363, %v412
        %414 = vmatmul.f32.gmra.mxu0 %v338
        %v415 = vpop.f32.mrf.mxu0
        %v416 = vadd.f32 %v363, %v415
        %417 = vmatmul.f32.gmra.mxu0 %v339
        %v418 = vpop.f32.mrf.mxu0
        %v419 = vadd.f32 %v363, %v418
        %420 = vmatmul.f32.gmra.mxu0 %v340
        %v421 = vpop.f32.mrf.mxu0
        %v422 = vadd.f32 %v363, %v421
        %423 = vmatmul.f32.gmra.mxu0 %v341
        %v424 = vpop.f32.mrf.mxu0
        %v425 = vadd.f32 %v363, %v424
        %426 = vmatmul.f32.gmra.mxu0 %v342
        %v427 = vpop.f32.mrf.mxu0
        %v428 = vadd.f32 %v363, %v427
        %429 = vdwg.mxu0
        %v430 = vmax.f32 %v383, 0.0
        %v431 = vmax.f32 %v386, 0.0
        %v432 = vmax.f32 %v389, 0.0
        %v433 = vmax.f32 %v392, 0.0
        %v434 = vmax.f32 %v395, 0.0
        %v435 = vmax.f32 %v398, 0.0
        %v436 = vmax.f32 %v401, 0.0
        %v437 = vmax.f32 %v404, 0.0
        %v438 = vmax.f32 %v407, 0.0
        %v439 = vmax.f32 %v410, 0.0
        %v440 = vmax.f32 %v413, 0.0
        %v441 = vmax.f32 %v416, 0.0
        %v442 = vmax.f32 %v419, 0.0
        %v443 = vmax.f32 %v422, 0.0
        %v444 = vmax.f32 %v425, 0.0
        %v445 = vmax.f32 %v428, 0.0
        %s446 = scalar_lea.vmem [#allocation5], 256
        %v447 = vld [vmem:[%s446] sm:$0xff]
        %v448 = vld [vmem:[%s446 + $0x8] sm:$0xff]
        %v449 = vld [vmem:[%s446 + $0x10] sm:$0xff]
        %v450 = vld [vmem:[%s446 + $0x18] sm:$0xff]
        %v451 = vld [vmem:[%s446 + $0x20] sm:$0xff]
        %v452 = vld [vmem:[%s446 + $0x28] sm:$0xff]
        %v453 = vld [vmem:[%s446 + $0x30] sm:$0xff]
        %v454 = vld [vmem:[%s446 + $0x38] sm:$0xff]
        %v455 = vld [vmem:[%s446 + $0x40] sm:$0xff]
        %v456 = vld [vmem:[%s446 + $0x48] sm:$0xff]
        %v457 = vld [vmem:[%s446 + $0x50] sm:$0xff]
        %v458 = vld [vmem:[%s446 + $0x58] sm:$0xff]
        %v459 = vld [vmem:[%s446 + $0x60] sm:$0xff]
        %v460 = vld [vmem:[%s446 + $0x68] sm:$0xff]
        %v461 = vld [vmem:[%s446 + $0x70] sm:$0xff]
        %v462 = vld [vmem:[%s446 + $0x78] sm:$0xff]
        %s463 = scalar_lea.vmem [#allocation7], 2
        %v464 = vld [vmem:[%s463] sm:$0x1]
        %v466 = vperm.slane %v464, 0
        %468 = vmatpush.msra.mxu0 %v462
        %469 = vmatpush.msra.mxu0 %v461
        %470 = vmatpush.msra.mxu0 %v460
        %471 = vmatpush.msra.mxu0 %v459
        %472 = vmatpush.msra.mxu0 %v458
        %473 = vmatpush.msra.mxu0 %v457
        %474 = vmatpush.msra.mxu0 %v456
        %475 = vmatpush.msra.mxu0 %v455
        %476 = vmatpush.msra.mxu0 %v454
        %477 = vmatpush.msra.mxu0 %v453
        %478 = vmatpush.msra.mxu0 %v452
        %479 = vmatpush.msra.mxu0 %v451
        %480 = vmatpush.msra.mxu0 %v450
        %481 = vmatpush.msra.mxu0 %v449
        %482 = vmatpush.msra.mxu0 %v448
        %483 = vmatpush.msra.mxu0 %v447
        %484 = vmatmul.f32.gmra.mxu0 %v430
        %v485 = vpop.f32.mrf.mxu0
        %v486 = vadd.f32 %v466, %v485
        %487 = vmatmul.f32.gmra.mxu0 %v431
        %v488 = vpop.f32.mrf.mxu0
        %v489 = vadd.f32 %v466, %v488
        %490 = vmatmul.f32.gmra.mxu0 %v432
        %v491 = vpop.f32.mrf.mxu0
        %v492 = vadd.f32 %v466, %v491
        %493 = vmatmul.f32.gmra.mxu0 %v433
        %v494 = vpop.f32.mrf.mxu0
        %v495 = vadd.f32 %v466, %v494
        %496 = vmatmul.f32.gmra.mxu0 %v434
        %v497 = vpop.f32.mrf.mxu0
        %v498 = vadd.f32 %v466, %v497
        %499 = vmatmul.f32.gmra.mxu0 %v435
        %v500 = vpop.f32.mrf.mxu0
        %v501 = vadd.f32 %v466, %v500
        %502 = vmatmul.f32.gmra.mxu0 %v436
        %v503 = vpop.f32.mrf.mxu0
        %v504 = vadd.f32 %v466, %v503
        %505 = vmatmul.f32.gmra.mxu0 %v437
        %v506 = vpop.f32.mrf.mxu0
        %v507 = vadd.f32 %v466, %v506
        %508 = vmatmul.f32.gmra.mxu0 %v438
        %v509 = vpop.f32.mrf.mxu0
        %v510 = vadd.f32 %v466, %v509
        %511 = vmatmul.f32.gmra.mxu0 %v439
        %v512 = vpop.f32.mrf.mxu0
        %v513 = vadd.f32 %v466, %v512
        %514 = vmatmul.f32.gmra.mxu0 %v440
        %v515 = vpop.f32.mrf.mxu0
        %v516 = vadd.f32 %v466, %v515
        %517 = vmatmul.f32.gmra.mxu0 %v441
        %v518 = vpop.f32.mrf.mxu0
        %v519 = vadd.f32 %v466, %v518
        %520 = vmatmul.f32.gmra.mxu0 %v442
        %v521 = vpop.f32.mrf.mxu0
        %v522 = vadd.f32 %v466, %v521
        %523 = vmatmul.f32.gmra.mxu0 %v443
        %v524 = vpop.f32.mrf.mxu0
        %v525 = vadd.f32 %v466, %v524
        %526 = vmatmul.f32.gmra.mxu0 %v444
        %v527 = vpop.f32.mrf.mxu0
        %v528 = vadd.f32 %v466, %v527
        %529 = vmatmul.f32.gmra.mxu0 %v445
        %v530 = vpop.f32.mrf.mxu0
        %v531 = vadd.f32 %v466, %v530
        %532 = vdwg.mxu0
        %v533 = vmax.f32 %v486, 0.0
        %v534 = vmax.f32 %v489, 0.0
        %v535 = vmax.f32 %v492, 0.0
        %v536 = vmax.f32 %v495, 0.0
        %v537 = vmax.f32 %v498, 0.0
        %v538 = vmax.f32 %v501, 0.0
        %v539 = vmax.f32 %v504, 0.0
        %v540 = vmax.f32 %v507, 0.0
        %v541 = vmax.f32 %v510, 0.0
        %v542 = vmax.f32 %v513, 0.0
        %v543 = vmax.f32 %v516, 0.0
        %v544 = vmax.f32 %v519, 0.0
        %v545 = vmax.f32 %v522, 0.0
        %v546 = vmax.f32 %v525, 0.0
        %v547 = vmax.f32 %v528, 0.0
        %v548 = vmax.f32 %v531, 0.0
        %s549 = scalar_lea.vmem [#allocation5], 384
        %v550 = vld [vmem:[%s549] sm:$0xff]
        %v551 = vld [vmem:[%s549 + $0x8] sm:$0xff]
        %v552 = vld [vmem:[%s549 + $0x10] sm:$0xff]
        %v553 = vld [vmem:[%s549 + $0x18] sm:$0xff]
        %v554 = vld [vmem:[%s549 + $0x20] sm:$0xff]
        %v555 = vld [vmem:[%s549 + $0x28] sm:$0xff]
        %v556 = vld [vmem:[%s549 + $0x30] sm:$0xff]
        %v557 = vld [vmem:[%s549 + $0x38] sm:$0xff]
        %v558 = vld [vmem:[%s549 + $0x40] sm:$0xff]
        %v559 = vld [vmem:[%s549 + $0x48] sm:$0xff]
        %v560 = vld [vmem:[%s549 + $0x50] sm:$0xff]
        %v561 = vld [vmem:[%s549 + $0x58] sm:$0xff]
        %v562 = vld [vmem:[%s549 + $0x60] sm:$0xff]
        %v563 = vld [vmem:[%s549 + $0x68] sm:$0xff]
        %v564 = vld [vmem:[%s549 + $0x70] sm:$0xff]
        %v565 = vld [vmem:[%s549 + $0x78] sm:$0xff]
        %s566 = scalar_lea.vmem [#allocation7], 3
        %v567 = vld [vmem:[%s566] sm:$0x1]
        %v569 = vperm.slane %v567, 0
        %571 = vmatpush.msra.mxu0 %v565
        %572 = vmatpush.msra.mxu0 %v564
        %573 = vmatpush.msra.mxu0 %v563
        %574 = vmatpush.msra.mxu0 %v562
        %575 = vmatpush.msra.mxu0 %v561
        %576 = vmatpush.msra.mxu0 %v560
        %577 = vmatpush.msra.mxu0 %v559
        %578 = vmatpush.msra.mxu0 %v558
        %579 = vmatpush.msra.mxu0 %v557
        %580 = vmatpush.msra.mxu0 %v556
        %581 = vmatpush.msra.mxu0 %v555
        %582 = vmatpush.msra.mxu0 %v554
        %583 = vmatpush.msra.mxu0 %v553
        %584 = vmatpush.msra.mxu0 %v552
        %585 = vmatpush.msra.mxu0 %v551
        %586 = vmatpush.msra.mxu0 %v550
        %587 = vmatmul.f32.gmra.mxu0 %v533
        %v588 = vpop.f32.mrf.mxu0
        %v589 = vadd.f32 %v569, %v588
        %590 = vmatmul.f32.gmra.mxu0 %v534
        %v591 = vpop.f32.mrf.mxu0
        %v592 = vadd.f32 %v569, %v591
        %593 = vmatmul.f32.gmra.mxu0 %v535
        %v594 = vpop.f32.mrf.mxu0
        %v595 = vadd.f32 %v569, %v594
        %596 = vmatmul.f32.gmra.mxu0 %v536
        %v597 = vpop.f32.mrf.mxu0
        %v598 = vadd.f32 %v569, %v597
        %599 = vmatmul.f32.gmra.mxu0 %v537
        %v600 = vpop.f32.mrf.mxu0
        %v601 = vadd.f32 %v569, %v600
        %602 = vmatmul.f32.gmra.mxu0 %v538
        %v603 = vpop.f32.mrf.mxu0
        %v604 = vadd.f32 %v569, %v603
        %605 = vmatmul.f32.gmra.mxu0 %v539
        %v606 = vpop.f32.mrf.mxu0
        %v607 = vadd.f32 %v569, %v606
        %608 = vmatmul.f32.gmra.mxu0 %v540
        %v609 = vpop.f32.mrf.mxu0
        %v610 = vadd.f32 %v569, %v609
        %611 = vmatmul.f32.gmra.mxu0 %v541
        %v612 = vpop.f32.mrf.mxu0
        %v613 = vadd.f32 %v569, %v612
        %614 = vmatmul.f32.gmra.mxu0 %v542
        %v615 = vpop.f32.mrf.mxu0
        %v616 = vadd.f32 %v569, %v615
        %617 = vmatmul.f32.gmra.mxu0 %v543
        %v618 = vpop.f32.mrf.mxu0
        %v619 = vadd.f32 %v569, %v618
        %620 = vmatmul.f32.gmra.mxu0 %v544
        %v621 = vpop.f32.mrf.mxu0
        %v622 = vadd.f32 %v569, %v621
        %623 = vmatmul.f32.gmra.mxu0 %v545
        %v624 = vpop.f32.mrf.mxu0
        %v625 = vadd.f32 %v569, %v624
        %626 = vmatmul.f32.gmra.mxu0 %v546
        %v627 = vpop.f32.mrf.mxu0
        %v628 = vadd.f32 %v569, %v627
        %629 = vmatmul.f32.gmra.mxu0 %v547
        %v630 = vpop.f32.mrf.mxu0
        %v631 = vadd.f32 %v569, %v630
        %632 = vmatmul.f32.gmra.mxu0 %v548
        %v633 = vpop.f32.mrf.mxu0
        %v634 = vadd.f32 %v569, %v633
        %635 = vdwg.mxu0
        %v636 = vmax.f32 %v589, 0.0
        %v637 = vmax.f32 %v592, 0.0
        %v638 = vmax.f32 %v595, 0.0
        %v639 = vmax.f32 %v598, 0.0
        %v640 = vmax.f32 %v601, 0.0
        %v641 = vmax.f32 %v604, 0.0
        %v642 = vmax.f32 %v607, 0.0
        %v643 = vmax.f32 %v610, 0.0
        %v644 = vmax.f32 %v613, 0.0
        %v645 = vmax.f32 %v616, 0.0
        %v646 = vmax.f32 %v619, 0.0
        %v647 = vmax.f32 %v622, 0.0
        %v648 = vmax.f32 %v625, 0.0
        %v649 = vmax.f32 %v628, 0.0
        %v650 = vmax.f32 %v631, 0.0
        %v651 = vmax.f32 %v634, 0.0
        %s652 = scalar_lea.vmem [#allocation5], 512
        %v653 = vld [vmem:[%s652] sm:$0xff]
        %v654 = vld [vmem:[%s652 + $0x8] sm:$0xff]
        %v655 = vld [vmem:[%s652 + $0x10] sm:$0xff]
        %v656 = vld [vmem:[%s652 + $0x18] sm:$0xff]
        %v657 = vld [vmem:[%s652 + $0x20] sm:$0xff]
        %v658 = vld [vmem:[%s652 + $0x28] sm:$0xff]
        %v659 = vld [vmem:[%s652 + $0x30] sm:$0xff]
        %v660 = vld [vmem:[%s652 + $0x38] sm:$0xff]
        %v661 = vld [vmem:[%s652 + $0x40] sm:$0xff]
        %v662 = vld [vmem:[%s652 + $0x48] sm:$0xff]
        %v663 = vld [vmem:[%s652 + $0x50] sm:$0xff]
        %v664 = vld [vmem:[%s652 + $0x58] sm:$0xff]
        %v665 = vld [vmem:[%s652 + $0x60] sm:$0xff]
        %v666 = vld [vmem:[%s652 + $0x68] sm:$0xff]
        %v667 = vld [vmem:[%s652 + $0x70] sm:$0xff]
        %v668 = vld [vmem:[%s652 + $0x78] sm:$0xff]
        %s669 = scalar_lea.vmem [#allocation7], 4
        %v670 = vld [vmem:[%s669] sm:$0x1]
        %v672 = vperm.slane %v670, 0
        %674 = vmatpush.msra.mxu0 %v668
        %675 = vmatpush.msra.mxu0 %v667
        %676 = vmatpush.msra.mxu0 %v666
        %677 = vmatpush.msra.mxu0 %v665
        %678 = vmatpush.msra.mxu0 %v664
        %679 = vmatpush.msra.mxu0 %v663
        %680 = vmatpush.msra.mxu0 %v662
        %681 = vmatpush.msra.mxu0 %v661
        %682 = vmatpush.msra.mxu0 %v660
        %683 = vmatpush.msra.mxu0 %v659
        %684 = vmatpush.msra.mxu0 %v658
        %685 = vmatpush.msra.mxu0 %v657
        %686 = vmatpush.msra.mxu0 %v656
        %687 = vmatpush.msra.mxu0 %v655
        %688 = vmatpush.msra.mxu0 %v654
        %689 = vmatpush.msra.mxu0 %v653
        %690 = vmatmul.f32.gmra.mxu0 %v636
        %v691 = vpop.f32.mrf.mxu0
        %v692 = vadd.f32 %v672, %v691
        %693 = vmatmul.f32.gmra.mxu0 %v637
        %v694 = vpop.f32.mrf.mxu0
        %v695 = vadd.f32 %v672, %v694
        %696 = vmatmul.f32.gmra.mxu0 %v638
        %v697 = vpop.f32.mrf.mxu0
        %v698 = vadd.f32 %v672, %v697
        %699 = vmatmul.f32.gmra.mxu0 %v639
        %v700 = vpop.f32.mrf.mxu0
        %v701 = vadd.f32 %v672, %v700
        %702 = vmatmul.f32.gmra.mxu0 %v640
        %v703 = vpop.f32.mrf.mxu0
        %v704 = vadd.f32 %v672, %v703
        %705 = vmatmul.f32.gmra.mxu0 %v641
        %v706 = vpop.f32.mrf.mxu0
        %v707 = vadd.f32 %v672, %v706
        %708 = vmatmul.f32.gmra.mxu0 %v642
        %v709 = vpop.f32.mrf.mxu0
        %v710 = vadd.f32 %v672, %v709
        %711 = vmatmul.f32.gmra.mxu0 %v643
        %v712 = vpop.f32.mrf.mxu0
        %v713 = vadd.f32 %v672, %v712
        %714 = vmatmul.f32.gmra.mxu0 %v644
        %v715 = vpop.f32.mrf.mxu0
        %v716 = vadd.f32 %v672, %v715
        %717 = vmatmul.f32.gmra.mxu0 %v645
        %v718 = vpop.f32.mrf.mxu0
        %v719 = vadd.f32 %v672, %v718
        %720 = vmatmul.f32.gmra.mxu0 %v646
        %v721 = vpop.f32.mrf.mxu0
        %v722 = vadd.f32 %v672, %v721
        %723 = vmatmul.f32.gmra.mxu0 %v647
        %v724 = vpop.f32.mrf.mxu0
        %v725 = vadd.f32 %v672, %v724
        %726 = vmatmul.f32.gmra.mxu0 %v648
        %v727 = vpop.f32.mrf.mxu0
        %v728 = vadd.f32 %v672, %v727
        %729 = vmatmul.f32.gmra.mxu0 %v649
        %v730 = vpop.f32.mrf.mxu0
        %v731 = vadd.f32 %v672, %v730
        %732 = vmatmul.f32.gmra.mxu0 %v650
        %v733 = vpop.f32.mrf.mxu0
        %v734 = vadd.f32 %v672, %v733
        %735 = vmatmul.f32.gmra.mxu0 %v651
        %v736 = vpop.f32.mrf.mxu0
        %v737 = vadd.f32 %v672, %v736
        %738 = vdwg.mxu0
        %v739 = vmax.f32 %v692, 0.0
        %v740 = vmax.f32 %v695, 0.0
        %v741 = vmax.f32 %v698, 0.0
        %v742 = vmax.f32 %v701, 0.0
        %v743 = vmax.f32 %v704, 0.0
        %v744 = vmax.f32 %v707, 0.0
        %v745 = vmax.f32 %v710, 0.0
        %v746 = vmax.f32 %v713, 0.0
        %v747 = vmax.f32 %v716, 0.0
        %v748 = vmax.f32 %v719, 0.0
        %v749 = vmax.f32 %v722, 0.0
        %v750 = vmax.f32 %v725, 0.0
        %v751 = vmax.f32 %v728, 0.0
        %v752 = vmax.f32 %v731, 0.0
        %v753 = vmax.f32 %v734, 0.0
        %v754 = vmax.f32 %v737, 0.0
        %s755 = scalar_lea.vmem [#allocation5], 640
        %v756 = vld [vmem:[%s755] sm:$0xff]
        %v757 = vld [vmem:[%s755 + $0x8] sm:$0xff]
        %v758 = vld [vmem:[%s755 + $0x10] sm:$0xff]
        %v759 = vld [vmem:[%s755 + $0x18] sm:$0xff]
        %v760 = vld [vmem:[%s755 + $0x20] sm:$0xff]
        %v761 = vld [vmem:[%s755 + $0x28] sm:$0xff]
        %v762 = vld [vmem:[%s755 + $0x30] sm:$0xff]
        %v763 = vld [vmem:[%s755 + $0x38] sm:$0xff]
        %v764 = vld [vmem:[%s755 + $0x40] sm:$0xff]
        %v765 = vld [vmem:[%s755 + $0x48] sm:$0xff]
        %v766 = vld [vmem:[%s755 + $0x50] sm:$0xff]
        %v767 = vld [vmem:[%s755 + $0x58] sm:$0xff]
        %v768 = vld [vmem:[%s755 + $0x60] sm:$0xff]
        %v769 = vld [vmem:[%s755 + $0x68] sm:$0xff]
        %v770 = vld [vmem:[%s755 + $0x70] sm:$0xff]
        %v771 = vld [vmem:[%s755 + $0x78] sm:$0xff]
        %s772 = scalar_lea.vmem [#allocation7], 5
        %v773 = vld [vmem:[%s772] sm:$0x1]
        %v775 = vperm.slane %v773, 0
        %777 = vmatpush.msra.mxu0 %v771
        %778 = vmatpush.msra.mxu0 %v770
        %779 = vmatpush.msra.mxu0 %v769
        %780 = vmatpush.msra.mxu0 %v768
        %781 = vmatpush.msra.mxu0 %v767
        %782 = vmatpush.msra.mxu0 %v766
        %783 = vmatpush.msra.mxu0 %v765
        %784 = vmatpush.msra.mxu0 %v764
        %785 = vmatpush.msra.mxu0 %v763
        %786 = vmatpush.msra.mxu0 %v762
        %787 = vmatpush.msra.mxu0 %v761
        %788 = vmatpush.msra.mxu0 %v760
        %789 = vmatpush.msra.mxu0 %v759
        %790 = vmatpush.msra.mxu0 %v758
        %791 = vmatpush.msra.mxu0 %v757
        %792 = vmatpush.msra.mxu0 %v756
        %793 = vmatmul.f32.gmra.mxu0 %v739
        %v794 = vpop.f32.mrf.mxu0
        %v795 = vadd.f32 %v775, %v794
        %796 = vmatmul.f32.gmra.mxu0 %v740
        %v797 = vpop.f32.mrf.mxu0
        %v798 = vadd.f32 %v775, %v797
        %799 = vmatmul.f32.gmra.mxu0 %v741
        %v800 = vpop.f32.mrf.mxu0
        %v801 = vadd.f32 %v775, %v800
        %802 = vmatmul.f32.gmra.mxu0 %v742
        %v803 = vpop.f32.mrf.mxu0
        %v804 = vadd.f32 %v775, %v803
        %805 = vmatmul.f32.gmra.mxu0 %v743
        %v806 = vpop.f32.mrf.mxu0
        %v807 = vadd.f32 %v775, %v806
        %808 = vmatmul.f32.gmra.mxu0 %v744
        %v809 = vpop.f32.mrf.mxu0
        %v810 = vadd.f32 %v775, %v809
        %811 = vmatmul.f32.gmra.mxu0 %v745
        %v812 = vpop.f32.mrf.mxu0
        %v813 = vadd.f32 %v775, %v812
        %814 = vmatmul.f32.gmra.mxu0 %v746
        %v815 = vpop.f32.mrf.mxu0
        %v816 = vadd.f32 %v775, %v815
        %817 = vmatmul.f32.gmra.mxu0 %v747
        %v818 = vpop.f32.mrf.mxu0
        %v819 = vadd.f32 %v775, %v818
        %820 = vmatmul.f32.gmra.mxu0 %v748
        %v821 = vpop.f32.mrf.mxu0
        %v822 = vadd.f32 %v775, %v821
        %823 = vmatmul.f32.gmra.mxu0 %v749
        %v824 = vpop.f32.mrf.mxu0
        %v825 = vadd.f32 %v775, %v824
        %826 = vmatmul.f32.gmra.mxu0 %v750
        %v827 = vpop.f32.mrf.mxu0
        %v828 = vadd.f32 %v775, %v827
        %829 = vmatmul.f32.gmra.mxu0 %v751
        %v830 = vpop.f32.mrf.mxu0
        %v831 = vadd.f32 %v775, %v830
        %832 = vmatmul.f32.gmra.mxu0 %v752
        %v833 = vpop.f32.mrf.mxu0
        %v834 = vadd.f32 %v775, %v833
        %835 = vmatmul.f32.gmra.mxu0 %v753
        %v836 = vpop.f32.mrf.mxu0
        %v837 = vadd.f32 %v775, %v836
        %838 = vmatmul.f32.gmra.mxu0 %v754
        %v839 = vpop.f32.mrf.mxu0
        %v840 = vadd.f32 %v775, %v839
        %841 = vdwg.mxu0
        %v842 = vmax.f32 %v795, 0.0
        %v843 = vmax.f32 %v798, 0.0
        %v844 = vmax.f32 %v801, 0.0
        %v845 = vmax.f32 %v804, 0.0
        %v846 = vmax.f32 %v807, 0.0
        %v847 = vmax.f32 %v810, 0.0
        %v848 = vmax.f32 %v813, 0.0
        %v849 = vmax.f32 %v816, 0.0
        %v850 = vmax.f32 %v819, 0.0
        %v851 = vmax.f32 %v822, 0.0
        %v852 = vmax.f32 %v825, 0.0
        %v853 = vmax.f32 %v828, 0.0
        %v854 = vmax.f32 %v831, 0.0
        %v855 = vmax.f32 %v834, 0.0
        %v856 = vmax.f32 %v837, 0.0
        %v857 = vmax.f32 %v840, 0.0
        %s858 = scalar_lea.vmem [#allocation5], 768
        %v859 = vld [vmem:[%s858] sm:$0xff]
        %v860 = vld [vmem:[%s858 + $0x8] sm:$0xff]
        %v861 = vld [vmem:[%s858 + $0x10] sm:$0xff]
        %v862 = vld [vmem:[%s858 + $0x18] sm:$0xff]
        %v863 = vld [vmem:[%s858 + $0x20] sm:$0xff]
        %v864 = vld [vmem:[%s858 + $0x28] sm:$0xff]
        %v865 = vld [vmem:[%s858 + $0x30] sm:$0xff]
        %v866 = vld [vmem:[%s858 + $0x38] sm:$0xff]
        %v867 = vld [vmem:[%s858 + $0x40] sm:$0xff]
        %v868 = vld [vmem:[%s858 + $0x48] sm:$0xff]
        %v869 = vld [vmem:[%s858 + $0x50] sm:$0xff]
        %v870 = vld [vmem:[%s858 + $0x58] sm:$0xff]
        %v871 = vld [vmem:[%s858 + $0x60] sm:$0xff]
        %v872 = vld [vmem:[%s858 + $0x68] sm:$0xff]
        %v873 = vld [vmem:[%s858 + $0x70] sm:$0xff]
        %v874 = vld [vmem:[%s858 + $0x78] sm:$0xff]
        %s875 = scalar_lea.vmem [#allocation7], 6
        %v876 = vld [vmem:[%s875] sm:$0x1]
        %v878 = vperm.slane %v876, 0
        %880 = vmatpush.msra.mxu0 %v874
        %881 = vmatpush.msra.mxu0 %v873
        %882 = vmatpush.msra.mxu0 %v872
        %883 = vmatpush.msra.mxu0 %v871
        %884 = vmatpush.msra.mxu0 %v870
        %885 = vmatpush.msra.mxu0 %v869
        %886 = vmatpush.msra.mxu0 %v868
        %887 = vmatpush.msra.mxu0 %v867
        %888 = vmatpush.msra.mxu0 %v866
        %889 = vmatpush.msra.mxu0 %v865
        %890 = vmatpush.msra.mxu0 %v864
        %891 = vmatpush.msra.mxu0 %v863
        %892 = vmatpush.msra.mxu0 %v862
        %893 = vmatpush.msra.mxu0 %v861
        %894 = vmatpush.msra.mxu0 %v860
        %895 = vmatpush.msra.mxu0 %v859
        %896 = vmatmul.f32.gmra.mxu0 %v842
        %v897 = vpop.f32.mrf.mxu0
        %v898 = vadd.f32 %v878, %v897
        %899 = vmatmul.f32.gmra.mxu0 %v843
        %v900 = vpop.f32.mrf.mxu0
        %v901 = vadd.f32 %v878, %v900
        %902 = vmatmul.f32.gmra.mxu0 %v844
        %v903 = vpop.f32.mrf.mxu0
        %v904 = vadd.f32 %v878, %v903
        %905 = vmatmul.f32.gmra.mxu0 %v845
        %v906 = vpop.f32.mrf.mxu0
        %v907 = vadd.f32 %v878, %v906
        %908 = vmatmul.f32.gmra.mxu0 %v846
        %v909 = vpop.f32.mrf.mxu0
        %v910 = vadd.f32 %v878, %v909
        %911 = vmatmul.f32.gmra.mxu0 %v847
        %v912 = vpop.f32.mrf.mxu0
        %v913 = vadd.f32 %v878, %v912
        %914 = vmatmul.f32.gmra.mxu0 %v848
        %v915 = vpop.f32.mrf.mxu0
        %v916 = vadd.f32 %v878, %v915
        %917 = vmatmul.f32.gmra.mxu0 %v849
        %v918 = vpop.f32.mrf.mxu0
        %v919 = vadd.f32 %v878, %v918
        %920 = vmatmul.f32.gmra.mxu0 %v850
        %v921 = vpop.f32.mrf.mxu0
        %v922 = vadd.f32 %v878, %v921
        %923 = vmatmul.f32.gmra.mxu0 %v851
        %v924 = vpop.f32.mrf.mxu0
        %v925 = vadd.f32 %v878, %v924
        %926 = vmatmul.f32.gmra.mxu0 %v852
        %v927 = vpop.f32.mrf.mxu0
        %v928 = vadd.f32 %v878, %v927
        %929 = vmatmul.f32.gmra.mxu0 %v853
        %v930 = vpop.f32.mrf.mxu0
        %v931 = vadd.f32 %v878, %v930
        %932 = vmatmul.f32.gmra.mxu0 %v854
        %v933 = vpop.f32.mrf.mxu0
        %v934 = vadd.f32 %v878, %v933
        %935 = vmatmul.f32.gmra.mxu0 %v855
        %v936 = vpop.f32.mrf.mxu0
        %v937 = vadd.f32 %v878, %v936
        %938 = vmatmul.f32.gmra.mxu0 %v856
        %v939 = vpop.f32.mrf.mxu0
        %v940 = vadd.f32 %v878, %v939
        %941 = vmatmul.f32.gmra.mxu0 %v857
        %v942 = vpop.f32.mrf.mxu0
        %v943 = vadd.f32 %v878, %v942
        %944 = vdwg.mxu0
        %v945 = vmax.f32 %v898, 0.0
        %v946 = vmax.f32 %v901, 0.0
        %v947 = vmax.f32 %v904, 0.0
        %v948 = vmax.f32 %v907, 0.0
        %v949 = vmax.f32 %v910, 0.0
        %v950 = vmax.f32 %v913, 0.0
        %v951 = vmax.f32 %v916, 0.0
        %v952 = vmax.f32 %v919, 0.0
        %v953 = vmax.f32 %v922, 0.0
        %v954 = vmax.f32 %v925, 0.0
        %v955 = vmax.f32 %v928, 0.0
        %v956 = vmax.f32 %v931, 0.0
        %v957 = vmax.f32 %v934, 0.0
        %v958 = vmax.f32 %v937, 0.0
        %v959 = vmax.f32 %v940, 0.0
        %v960 = vmax.f32 %v943, 0.0
        %s961 = scalar_lea.vmem [#allocation5], 896
        %v962 = vld [vmem:[%s961] sm:$0xff]
        %v963 = vld [vmem:[%s961 + $0x8] sm:$0xff]
        %v964 = vld [vmem:[%s961 + $0x10] sm:$0xff]
        %v965 = vld [vmem:[%s961 + $0x18] sm:$0xff]
        %v966 = vld [vmem:[%s961 + $0x20] sm:$0xff]
        %v967 = vld [vmem:[%s961 + $0x28] sm:$0xff]
        %v968 = vld [vmem:[%s961 + $0x30] sm:$0xff]
        %v969 = vld [vmem:[%s961 + $0x38] sm:$0xff]
        %v970 = vld [vmem:[%s961 + $0x40] sm:$0xff]
        %v971 = vld [vmem:[%s961 + $0x48] sm:$0xff]
        %v972 = vld [vmem:[%s961 + $0x50] sm:$0xff]
        %v973 = vld [vmem:[%s961 + $0x58] sm:$0xff]
        %v974 = vld [vmem:[%s961 + $0x60] sm:$0xff]
        %v975 = vld [vmem:[%s961 + $0x68] sm:$0xff]
        %v976 = vld [vmem:[%s961 + $0x70] sm:$0xff]
        %v977 = vld [vmem:[%s961 + $0x78] sm:$0xff]
        %s978 = scalar_lea.vmem [#allocation7], 7
        %v979 = vld [vmem:[%s978] sm:$0x1]
        %v981 = vperm.slane %v979, 0
        %983 = vmatpush.msra.mxu0 %v977
        %984 = vmatpush.msra.mxu0 %v976
        %985 = vmatpush.msra.mxu0 %v975
        %986 = vmatpush.msra.mxu0 %v974
        %987 = vmatpush.msra.mxu0 %v973
        %988 = vmatpush.msra.mxu0 %v972
        %989 = vmatpush.msra.mxu0 %v971
        %990 = vmatpush.msra.mxu0 %v970
        %991 = vmatpush.msra.mxu0 %v969
        %992 = vmatpush.msra.mxu0 %v968
        %993 = vmatpush.msra.mxu0 %v967
        %994 = vmatpush.msra.mxu0 %v966
        %995 = vmatpush.msra.mxu0 %v965
        %996 = vmatpush.msra.mxu0 %v964
        %997 = vmatpush.msra.mxu0 %v963
        %998 = vmatpush.msra.mxu0 %v962
        %999 = vmatmul.f32.gmra.mxu0 %v945
        %v1000 = vpop.f32.mrf.mxu0
        %v1001 = vadd.f32 %v981, %v1000
        %1002 = vmatmul.f32.gmra.mxu0 %v946
        %v1003 = vpop.f32.mrf.mxu0
        %v1004 = vadd.f32 %v981, %v1003
        %1005 = vmatmul.f32.gmra.mxu0 %v947
        %v1006 = vpop.f32.mrf.mxu0
        %v1007 = vadd.f32 %v981, %v1006
        %1008 = vmatmul.f32.gmra.mxu0 %v948
        %v1009 = vpop.f32.mrf.mxu0
        %v1010 = vadd.f32 %v981, %v1009
        %1011 = vmatmul.f32.gmra.mxu0 %v949
        %v1012 = vpop.f32.mrf.mxu0
        %v1013 = vadd.f32 %v981, %v1012
        %1014 = vmatmul.f32.gmra.mxu0 %v950
        %v1015 = vpop.f32.mrf.mxu0
        %v1016 = vadd.f32 %v981, %v1015
        %1017 = vmatmul.f32.gmra.mxu0 %v951
        %v1018 = vpop.f32.mrf.mxu0
        %v1019 = vadd.f32 %v981, %v1018
        %1020 = vmatmul.f32.gmra.mxu0 %v952
        %v1021 = vpop.f32.mrf.mxu0
        %v1022 = vadd.f32 %v981, %v1021
        %1023 = vmatmul.f32.gmra.mxu0 %v953
        %v1024 = vpop.f32.mrf.mxu0
        %v1025 = vadd.f32 %v981, %v1024
        %1026 = vmatmul.f32.gmra.mxu0 %v954
        %v1027 = vpop.f32.mrf.mxu0
        %v1028 = vadd.f32 %v981, %v1027
        %1029 = vmatmul.f32.gmra.mxu0 %v955
        %v1030 = vpop.f32.mrf.mxu0
        %v1031 = vadd.f32 %v981, %v1030
        %1032 = vmatmul.f32.gmra.mxu0 %v956
        %v1033 = vpop.f32.mrf.mxu0
        %v1034 = vadd.f32 %v981, %v1033
        %1035 = vmatmul.f32.gmra.mxu0 %v957
        %v1036 = vpop.f32.mrf.mxu0
        %v1037 = vadd.f32 %v981, %v1036
        %1038 = vmatmul.f32.gmra.mxu0 %v958
        %v1039 = vpop.f32.mrf.mxu0
        %v1040 = vadd.f32 %v981, %v1039
        %1041 = vmatmul.f32.gmra.mxu0 %v959
        %v1042 = vpop.f32.mrf.mxu0
        %v1043 = vadd.f32 %v981, %v1042
        %1044 = vmatmul.f32.gmra.mxu0 %v960
        %v1045 = vpop.f32.mrf.mxu0
        %v1046 = vadd.f32 %v981, %v1045
        %1047 = vdwg.mxu0
        %v1048 = vmax.f32 %v1001, 0.0
        %v1049 = vmax.f32 %v1004, 0.0
        %v1050 = vmax.f32 %v1007, 0.0
        %v1051 = vmax.f32 %v1010, 0.0
        %v1052 = vmax.f32 %v1013, 0.0
        %v1053 = vmax.f32 %v1016, 0.0
        %v1054 = vmax.f32 %v1019, 0.0
        %v1055 = vmax.f32 %v1022, 0.0
        %v1056 = vmax.f32 %v1025, 0.0
        %v1057 = vmax.f32 %v1028, 0.0
        %v1058 = vmax.f32 %v1031, 0.0
        %v1059 = vmax.f32 %v1034, 0.0
        %v1060 = vmax.f32 %v1037, 0.0
        %v1061 = vmax.f32 %v1040, 0.0
        %v1062 = vmax.f32 %v1043, 0.0
        %v1063 = vmax.f32 %v1046, 0.0
        %s1064 = scalar_lea.vmem [#allocation5], 1024
        %v1065 = vld [vmem:[%s1064] sm:$0xff]
        %v1066 = vld [vmem:[%s1064 + $0x8] sm:$0xff]
        %v1067 = vld [vmem:[%s1064 + $0x10] sm:$0xff]
        %v1068 = vld [vmem:[%s1064 + $0x18] sm:$0xff]
        %v1069 = vld [vmem:[%s1064 + $0x20] sm:$0xff]
        %v1070 = vld [vmem:[%s1064 + $0x28] sm:$0xff]
        %v1071 = vld [vmem:[%s1064 + $0x30] sm:$0xff]
        %v1072 = vld [vmem:[%s1064 + $0x38] sm:$0xff]
        %v1073 = vld [vmem:[%s1064 + $0x40] sm:$0xff]
        %v1074 = vld [vmem:[%s1064 + $0x48] sm:$0xff]
        %v1075 = vld [vmem:[%s1064 + $0x50] sm:$0xff]
        %v1076 = vld [vmem:[%s1064 + $0x58] sm:$0xff]
        %v1077 = vld [vmem:[%s1064 + $0x60] sm:$0xff]
        %v1078 = vld [vmem:[%s1064 + $0x68] sm:$0xff]
        %v1079 = vld [vmem:[%s1064 + $0x70] sm:$0xff]
        %v1080 = vld [vmem:[%s1064 + $0x78] sm:$0xff]
        %s1081 = scalar_lea.vmem [#allocation7], 8
        %v1082 = vld [vmem:[%s1081] sm:$0x1]
        %v1084 = vperm.slane %v1082, 0
        %1086 = vmatpush.msra.mxu0 %v1080
        %1087 = vmatpush.msra.mxu0 %v1079
        %1088 = vmatpush.msra.mxu0 %v1078
        %1089 = vmatpush.msra.mxu0 %v1077
        %1090 = vmatpush.msra.mxu0 %v1076
        %1091 = vmatpush.msra.mxu0 %v1075
        %1092 = vmatpush.msra.mxu0 %v1074
        %1093 = vmatpush.msra.mxu0 %v1073
        %1094 = vmatpush.msra.mxu0 %v1072
        %1095 = vmatpush.msra.mxu0 %v1071
        %1096 = vmatpush.msra.mxu0 %v1070
        %1097 = vmatpush.msra.mxu0 %v1069
        %1098 = vmatpush.msra.mxu0 %v1068
        %1099 = vmatpush.msra.mxu0 %v1067
        %1100 = vmatpush.msra.mxu0 %v1066
        %1101 = vmatpush.msra.mxu0 %v1065
        %1102 = vmatmul.f32.gmra.mxu0 %v1048
        %v1103 = vpop.f32.mrf.mxu0
        %v1104 = vadd.f32 %v1084, %v1103
        %1105 = vmatmul.f32.gmra.mxu0 %v1049
        %v1106 = vpop.f32.mrf.mxu0
        %v1107 = vadd.f32 %v1084, %v1106
        %1108 = vmatmul.f32.gmra.mxu0 %v1050
        %v1109 = vpop.f32.mrf.mxu0
        %v1110 = vadd.f32 %v1084, %v1109
        %1111 = vmatmul.f32.gmra.mxu0 %v1051
        %v1112 = vpop.f32.mrf.mxu0
        %v1113 = vadd.f32 %v1084, %v1112
        %1114 = vmatmul.f32.gmra.mxu0 %v1052
        %v1115 = vpop.f32.mrf.mxu0
        %v1116 = vadd.f32 %v1084, %v1115
        %1117 = vmatmul.f32.gmra.mxu0 %v1053
        %v1118 = vpop.f32.mrf.mxu0
        %v1119 = vadd.f32 %v1084, %v1118
        %1120 = vmatmul.f32.gmra.mxu0 %v1054
        %v1121 = vpop.f32.mrf.mxu0
        %v1122 = vadd.f32 %v1084, %v1121
        %1123 = vmatmul.f32.gmra.mxu0 %v1055
        %v1124 = vpop.f32.mrf.mxu0
        %v1125 = vadd.f32 %v1084, %v1124
        %1126 = vmatmul.f32.gmra.mxu0 %v1056
        %v1127 = vpop.f32.mrf.mxu0
        %v1128 = vadd.f32 %v1084, %v1127
        %1129 = vmatmul.f32.gmra.mxu0 %v1057
        %v1130 = vpop.f32.mrf.mxu0
        %v1131 = vadd.f32 %v1084, %v1130
        %1132 = vmatmul.f32.gmra.mxu0 %v1058
        %v1133 = vpop.f32.mrf.mxu0
        %v1134 = vadd.f32 %v1084, %v1133
        %1135 = vmatmul.f32.gmra.mxu0 %v1059
        %v1136 = vpop.f32.mrf.mxu0
        %v1137 = vadd.f32 %v1084, %v1136
        %1138 = vmatmul.f32.gmra.mxu0 %v1060
        %v1139 = vpop.f32.mrf.mxu0
        %v1140 = vadd.f32 %v1084, %v1139
        %1141 = vmatmul.f32.gmra.mxu0 %v1061
        %v1142 = vpop.f32.mrf.mxu0
        %v1143 = vadd.f32 %v1084, %v1142
        %1144 = vmatmul.f32.gmra.mxu0 %v1062
        %v1145 = vpop.f32.mrf.mxu0
        %v1146 = vadd.f32 %v1084, %v1145
        %1147 = vmatmul.f32.gmra.mxu0 %v1063
        %v1148 = vpop.f32.mrf.mxu0
        %v1149 = vadd.f32 %v1084, %v1148
        %1150 = vdwg.mxu0
        %v1151 = vmax.f32 %v1104, 0.0
        %v1152 = vmax.f32 %v1107, 0.0
        %v1153 = vmax.f32 %v1110, 0.0
        %v1154 = vmax.f32 %v1113, 0.0
        %v1155 = vmax.f32 %v1116, 0.0
        %v1156 = vmax.f32 %v1119, 0.0
        %v1157 = vmax.f32 %v1122, 0.0
        %v1158 = vmax.f32 %v1125, 0.0
        %v1159 = vmax.f32 %v1128, 0.0
        %v1160 = vmax.f32 %v1131, 0.0
        %v1161 = vmax.f32 %v1134, 0.0
        %v1162 = vmax.f32 %v1137, 0.0
        %v1163 = vmax.f32 %v1140, 0.0
        %v1164 = vmax.f32 %v1143, 0.0
        %v1165 = vmax.f32 %v1146, 0.0
        %v1166 = vmax.f32 %v1149, 0.0
        %s1167 = scalar_lea.vmem [#allocation5], 1152
        %v1168 = vld [vmem:[%s1167] sm:$0xff]
        %v1169 = vld [vmem:[%s1167 + $0x8] sm:$0xff]
        %v1170 = vld [vmem:[%s1167 + $0x10] sm:$0xff]
        %v1171 = vld [vmem:[%s1167 + $0x18] sm:$0xff]
        %v1172 = vld [vmem:[%s1167 + $0x20] sm:$0xff]
        %v1173 = vld [vmem:[%s1167 + $0x28] sm:$0xff]
        %v1174 = vld [vmem:[%s1167 + $0x30] sm:$0xff]
        %v1175 = vld [vmem:[%s1167 + $0x38] sm:$0xff]
        %v1176 = vld [vmem:[%s1167 + $0x40] sm:$0xff]
        %v1177 = vld [vmem:[%s1167 + $0x48] sm:$0xff]
        %v1178 = vld [vmem:[%s1167 + $0x50] sm:$0xff]
        %v1179 = vld [vmem:[%s1167 + $0x58] sm:$0xff]
        %v1180 = vld [vmem:[%s1167 + $0x60] sm:$0xff]
        %v1181 = vld [vmem:[%s1167 + $0x68] sm:$0xff]
        %v1182 = vld [vmem:[%s1167 + $0x70] sm:$0xff]
        %v1183 = vld [vmem:[%s1167 + $0x78] sm:$0xff]
        %s1184 = scalar_lea.vmem [#allocation7], 9
        %v1185 = vld [vmem:[%s1184] sm:$0x1]
        %v1187 = vperm.slane %v1185, 0
        %1189 = vmatpush.msra.mxu0 %v1183
        %1190 = vmatpush.msra.mxu0 %v1182
        %1191 = vmatpush.msra.mxu0 %v1181
        %1192 = vmatpush.msra.mxu0 %v1180
        %1193 = vmatpush.msra.mxu0 %v1179
        %1194 = vmatpush.msra.mxu0 %v1178
        %1195 = vmatpush.msra.mxu0 %v1177
        %1196 = vmatpush.msra.mxu0 %v1176
        %1197 = vmatpush.msra.mxu0 %v1175
        %1198 = vmatpush.msra.mxu0 %v1174
        %1199 = vmatpush.msra.mxu0 %v1173
        %1200 = vmatpush.msra.mxu0 %v1172
        %1201 = vmatpush.msra.mxu0 %v1171
        %1202 = vmatpush.msra.mxu0 %v1170
        %1203 = vmatpush.msra.mxu0 %v1169
        %1204 = vmatpush.msra.mxu0 %v1168
        %1205 = vmatmul.f32.gmra.mxu0 %v1151
        %v1206 = vpop.f32.mrf.mxu0
        %v1207 = vadd.f32 %v1187, %v1206
        %1208 = vmatmul.f32.gmra.mxu0 %v1152
        %v1209 = vpop.f32.mrf.mxu0
        %v1210 = vadd.f32 %v1187, %v1209
        %1211 = vmatmul.f32.gmra.mxu0 %v1153
        %v1212 = vpop.f32.mrf.mxu0
        %v1213 = vadd.f32 %v1187, %v1212
        %1214 = vmatmul.f32.gmra.mxu0 %v1154
        %v1215 = vpop.f32.mrf.mxu0
        %v1216 = vadd.f32 %v1187, %v1215
        %1217 = vmatmul.f32.gmra.mxu0 %v1155
        %v1218 = vpop.f32.mrf.mxu0
        %v1219 = vadd.f32 %v1187, %v1218
        %1220 = vmatmul.f32.gmra.mxu0 %v1156
        %v1221 = vpop.f32.mrf.mxu0
        %v1222 = vadd.f32 %v1187, %v1221
        %1223 = vmatmul.f32.gmra.mxu0 %v1157
        %v1224 = vpop.f32.mrf.mxu0
        %v1225 = vadd.f32 %v1187, %v1224
        %1226 = vmatmul.f32.gmra.mxu0 %v1158
        %v1227 = vpop.f32.mrf.mxu0
        %v1228 = vadd.f32 %v1187, %v1227
        %1229 = vmatmul.f32.gmra.mxu0 %v1159
        %v1230 = vpop.f32.mrf.mxu0
        %v1231 = vadd.f32 %v1187, %v1230
        %1232 = vmatmul.f32.gmra.mxu0 %v1160
        %v1233 = vpop.f32.mrf.mxu0
        %v1234 = vadd.f32 %v1187, %v1233
        %1235 = vmatmul.f32.gmra.mxu0 %v1161
        %v1236 = vpop.f32.mrf.mxu0
        %v1237 = vadd.f32 %v1187, %v1236
        %1238 = vmatmul.f32.gmra.mxu0 %v1162
        %v1239 = vpop.f32.mrf.mxu0
        %v1240 = vadd.f32 %v1187, %v1239
        %1241 = vmatmul.f32.gmra.mxu0 %v1163
        %v1242 = vpop.f32.mrf.mxu0
        %v1243 = vadd.f32 %v1187, %v1242
        %1244 = vmatmul.f32.gmra.mxu0 %v1164
        %v1245 = vpop.f32.mrf.mxu0
        %v1246 = vadd.f32 %v1187, %v1245
        %1247 = vmatmul.f32.gmra.mxu0 %v1165
        %v1248 = vpop.f32.mrf.mxu0
        %v1249 = vadd.f32 %v1187, %v1248
        %1250 = vmatmul.f32.gmra.mxu0 %v1166
        %v1251 = vpop.f32.mrf.mxu0
        %v1252 = vadd.f32 %v1187, %v1251
        %1253 = vdwg.mxu0
        %v1254 = vmax.f32 %v1207, 0.0
        %v1255 = vmax.f32 %v1210, 0.0
        %v1256 = vmax.f32 %v1213, 0.0
        %v1257 = vmax.f32 %v1216, 0.0
        %v1258 = vmax.f32 %v1219, 0.0
        %v1259 = vmax.f32 %v1222, 0.0
        %v1260 = vmax.f32 %v1225, 0.0
        %v1261 = vmax.f32 %v1228, 0.0
        %v1262 = vmax.f32 %v1231, 0.0
        %v1263 = vmax.f32 %v1234, 0.0
        %v1264 = vmax.f32 %v1237, 0.0
        %v1265 = vmax.f32 %v1240, 0.0
        %v1266 = vmax.f32 %v1243, 0.0
        %v1267 = vmax.f32 %v1246, 0.0
        %v1268 = vmax.f32 %v1249, 0.0
        %v1269 = vmax.f32 %v1252, 0.0
        %s1270 = scalar_lea.vmem [#allocation5], 1280
        %v1271 = vld [vmem:[%s1270] sm:$0xff]
        %v1272 = vld [vmem:[%s1270 + $0x8] sm:$0xff]
        %v1273 = vld [vmem:[%s1270 + $0x10] sm:$0xff]
        %v1274 = vld [vmem:[%s1270 + $0x18] sm:$0xff]
        %v1275 = vld [vmem:[%s1270 + $0x20] sm:$0xff]
        %v1276 = vld [vmem:[%s1270 + $0x28] sm:$0xff]
        %v1277 = vld [vmem:[%s1270 + $0x30] sm:$0xff]
        %v1278 = vld [vmem:[%s1270 + $0x38] sm:$0xff]
        %v1279 = vld [vmem:[%s1270 + $0x40] sm:$0xff]
        %v1280 = vld [vmem:[%s1270 + $0x48] sm:$0xff]
        %v1281 = vld [vmem:[%s1270 + $0x50] sm:$0xff]
        %v1282 = vld [vmem:[%s1270 + $0x58] sm:$0xff]
        %v1283 = vld [vmem:[%s1270 + $0x60] sm:$0xff]
        %v1284 = vld [vmem:[%s1270 + $0x68] sm:$0xff]
        %v1285 = vld [vmem:[%s1270 + $0x70] sm:$0xff]
        %v1286 = vld [vmem:[%s1270 + $0x78] sm:$0xff]
        %s1287 = scalar_lea.vmem [#allocation7], 10
        %v1288 = vld [vmem:[%s1287] sm:$0x1]
        %v1290 = vperm.slane %v1288, 0
        %1292 = vmatpush.msra.mxu0 %v1286
        %1293 = vmatpush.msra.mxu0 %v1285
        %1294 = vmatpush.msra.mxu0 %v1284
        %1295 = vmatpush.msra.mxu0 %v1283
        %1296 = vmatpush.msra.mxu0 %v1282
        %1297 = vmatpush.msra.mxu0 %v1281
        %1298 = vmatpush.msra.mxu0 %v1280
        %1299 = vmatpush.msra.mxu0 %v1279
        %1300 = vmatpush.msra.mxu0 %v1278
        %1301 = vmatpush.msra.mxu0 %v1277
        %1302 = vmatpush.msra.mxu0 %v1276
        %1303 = vmatpush.msra.mxu0 %v1275
        %1304 = vmatpush.msra.mxu0 %v1274
        %1305 = vmatpush.msra.mxu0 %v1273
        %1306 = vmatpush.msra.mxu0 %v1272
        %1307 = vmatpush.msra.mxu0 %v1271
        %1308 = vmatmul.f32.gmra.mxu0 %v1254
        %v1309 = vpop.f32.mrf.mxu0
        %v1310 = vadd.f32 %v1290, %v1309
        %1311 = vmatmul.f32.gmra.mxu0 %v1255
        %v1312 = vpop.f32.mrf.mxu0
        %v1313 = vadd.f32 %v1290, %v1312
        %1314 = vmatmul.f32.gmra.mxu0 %v1256
        %v1315 = vpop.f32.mrf.mxu0
        %v1316 = vadd.f32 %v1290, %v1315
        %1317 = vmatmul.f32.gmra.mxu0 %v1257
        %v1318 = vpop.f32.mrf.mxu0
        %v1319 = vadd.f32 %v1290, %v1318
        %1320 = vmatmul.f32.gmra.mxu0 %v1258
        %v1321 = vpop.f32.mrf.mxu0
        %v1322 = vadd.f32 %v1290, %v1321
        %1323 = vmatmul.f32.gmra.mxu0 %v1259
        %v1324 = vpop.f32.mrf.mxu0
        %v1325 = vadd.f32 %v1290, %v1324
        %1326 = vmatmul.f32.gmra.mxu0 %v1260
        %v1327 = vpop.f32.mrf.mxu0
        %v1328 = vadd.f32 %v1290, %v1327
        %1329 = vmatmul.f32.gmra.mxu0 %v1261
        %v1330 = vpop.f32.mrf.mxu0
        %v1331 = vadd.f32 %v1290, %v1330
        %1332 = vmatmul.f32.gmra.mxu0 %v1262
        %v1333 = vpop.f32.mrf.mxu0
        %v1334 = vadd.f32 %v1290, %v1333
        %1335 = vmatmul.f32.gmra.mxu0 %v1263
        %v1336 = vpop.f32.mrf.mxu0
        %v1337 = vadd.f32 %v1290, %v1336
        %1338 = vmatmul.f32.gmra.mxu0 %v1264
        %v1339 = vpop.f32.mrf.mxu0
        %v1340 = vadd.f32 %v1290, %v1339
        %1341 = vmatmul.f32.gmra.mxu0 %v1265
        %v1342 = vpop.f32.mrf.mxu0
        %v1343 = vadd.f32 %v1290, %v1342
        %1344 = vmatmul.f32.gmra.mxu0 %v1266
        %v1345 = vpop.f32.mrf.mxu0
        %v1346 = vadd.f32 %v1290, %v1345
        %1347 = vmatmul.f32.gmra.mxu0 %v1267
        %v1348 = vpop.f32.mrf.mxu0
        %v1349 = vadd.f32 %v1290, %v1348
        %1350 = vmatmul.f32.gmra.mxu0 %v1268
        %v1351 = vpop.f32.mrf.mxu0
        %v1352 = vadd.f32 %v1290, %v1351
        %1353 = vmatmul.f32.gmra.mxu0 %v1269
        %v1354 = vpop.f32.mrf.mxu0
        %v1355 = vadd.f32 %v1290, %v1354
        %1356 = vdwg.mxu0
        %v1357 = vxor.u32 %v1310, 2147483648
        %v1358 = vxor.u32 %v1313, 2147483648
        %v1359 = vxor.u32 %v1316, 2147483648
        %v1360 = vxor.u32 %v1319, 2147483648
        %v1361 = vxor.u32 %v1322, 2147483648
        %v1362 = vxor.u32 %v1325, 2147483648
        %v1363 = vxor.u32 %v1328, 2147483648
        %v1364 = vxor.u32 %v1331, 2147483648
        %v1365 = vxor.u32 %v1334, 2147483648
        %v1366 = vxor.u32 %v1337, 2147483648
        %v1367 = vxor.u32 %v1340, 2147483648
        %v1368 = vxor.u32 %v1343, 2147483648
        %v1369 = vxor.u32 %v1346, 2147483648
        %v1370 = vxor.u32 %v1349, 2147483648
        %v1371 = vxor.u32 %v1352, 2147483648
        %v1372 = vxor.u32 %v1355, 2147483648
        %v1373 = vmul.f32 %v1357, 1.442695
        %v1374 = vpow.pop %v1373
        %v1375 = vmul.f32 %v1358, 1.442695
        %v1376 = vpow.pop %v1375
        %v1377 = vmul.f32 %v1359, 1.442695
        %v1378 = vpow.pop %v1377
        %v1379 = vmul.f32 %v1360, 1.442695
        %v1380 = vpow.pop %v1379
        %v1381 = vmul.f32 %v1361, 1.442695
        %v1382 = vpow.pop %v1381
        %v1383 = vmul.f32 %v1362, 1.442695
        %v1384 = vpow.pop %v1383
        %v1385 = vmul.f32 %v1363, 1.442695
        %v1386 = vpow.pop %v1385
        %v1387 = vmul.f32 %v1364, 1.442695
        %v1388 = vpow.pop %v1387
        %v1389 = vmul.f32 %v1365, 1.442695
        %v1390 = vpow.pop %v1389
        %v1391 = vmul.f32 %v1366, 1.442695
        %v1392 = vpow.pop %v1391
        %v1393 = vmul.f32 %v1367, 1.442695
        %v1394 = vpow.pop %v1393
        %v1395 = vmul.f32 %v1368, 1.442695
        %v1396 = vpow.pop %v1395
        %v1397 = vmul.f32 %v1369, 1.442695
        %v1398 = vpow.pop %v1397
        %v1399 = vmul.f32 %v1370, 1.442695
        %v1400 = vpow.pop %v1399
        %v1401 = vmul.f32 %v1371, 1.442695
        %v1402 = vpow.pop %v1401
        %v1403 = vmul.f32 %v1372, 1.442695
        %v1404 = vpow.pop %v1403
        %v1405 = vadd.f32 %v1374, 1.0
        %v1406 = vadd.f32 %v1376, 1.0
        %v1407 = vadd.f32 %v1378, 1.0
        %v1408 = vadd.f32 %v1380, 1.0
        %v1409 = vadd.f32 %v1382, 1.0
        %v1410 = vadd.f32 %v1384, 1.0
        %v1411 = vadd.f32 %v1386, 1.0
        %v1412 = vadd.f32 %v1388, 1.0
        %v1413 = vadd.f32 %v1390, 1.0
        %v1414 = vadd.f32 %v1392, 1.0
        %v1415 = vadd.f32 %v1394, 1.0
        %v1416 = vadd.f32 %v1396, 1.0
        %v1417 = vadd.f32 %v1398, 1.0
        %v1418 = vadd.f32 %v1400, 1.0
        %v1419 = vadd.f32 %v1402, 1.0
        %v1420 = vadd.f32 %v1404, 1.0
        %v1421 = vrcp.pop %v1405
        %v1422 = vmul.f32 %v1405, %v1421
        %v1423 = vsub.f32 1.0, %v1422
        %v1424 = vmul.f32 %v1421, %v1423
        %v1425 = vadd.f32 %v1421, %v1424
        %vm1426 = vweird.f32 %v1405
        %vm1427 = vweird.f32 %v1421
        %vm1428 = vmor %vm1426, %vm1427
        %v1429 = vsel %vm1428, %v1421, %v1425
        %v1430 = vand.u32 2147483647, %v1405
        %vm1431 = vcmp.eq.f32.partialorder %v1430, 8.507059e+37
        %v1432 = vand.u32 %v1405, 2147483648
        %v1433 = vor.u32 1.1754944e-38, %v1432
        %v1434 = vsel %vm1431, %v1433, %v1429
        %v1435 = vmul.f32 1.0, %v1434
        %v1436 = vrcp.pop %v1406
        %v1437 = vmul.f32 %v1406, %v1436
        %v1438 = vsub.f32 1.0, %v1437
        %v1439 = vmul.f32 %v1436, %v1438
        %v1440 = vadd.f32 %v1436, %v1439
        %vm1441 = vweird.f32 %v1406
        %vm1442 = vweird.f32 %v1436
        %vm1443 = vmor %vm1441, %vm1442
        %v1444 = vsel %vm1443, %v1436, %v1440
        %v1445 = vand.u32 2147483647, %v1406
        %vm1446 = vcmp.eq.f32.partialorder %v1445, 8.507059e+37
        %v1447 = vand.u32 %v1406, 2147483648
        %v1448 = vor.u32 1.1754944e-38, %v1447
        %v1449 = vsel %vm1446, %v1448, %v1444
        %v1450 = vmul.f32 1.0, %v1449
        %v1451 = vrcp.pop %v1407
        %v1452 = vmul.f32 %v1407, %v1451
        %v1453 = vsub.f32 1.0, %v1452
        %v1454 = vmul.f32 %v1451, %v1453
        %v1455 = vadd.f32 %v1451, %v1454
        %vm1456 = vweird.f32 %v1407
        %vm1457 = vweird.f32 %v1451
        %vm1458 = vmor %vm1456, %vm1457
        %v1459 = vsel %vm1458, %v1451, %v1455
        %v1460 = vand.u32 2147483647, %v1407
        %vm1461 = vcmp.eq.f32.partialorder %v1460, 8.507059e+37
        %v1462 = vand.u32 %v1407, 2147483648
        %v1463 = vor.u32 1.1754944e-38, %v1462
        %v1464 = vsel %vm1461, %v1463, %v1459
        %v1465 = vmul.f32 1.0, %v1464
        %v1466 = vrcp.pop %v1408
        %v1467 = vmul.f32 %v1408, %v1466
        %v1468 = vsub.f32 1.0, %v1467
        %v1469 = vmul.f32 %v1466, %v1468
        %v1470 = vadd.f32 %v1466, %v1469
        %vm1471 = vweird.f32 %v1408
        %vm1472 = vweird.f32 %v1466
        %vm1473 = vmor %vm1471, %vm1472
        %v1474 = vsel %vm1473, %v1466, %v1470
        %v1475 = vand.u32 2147483647, %v1408
        %vm1476 = vcmp.eq.f32.partialorder %v1475, 8.507059e+37
        %v1477 = vand.u32 %v1408, 2147483648
        %v1478 = vor.u32 1.1754944e-38, %v1477
        %v1479 = vsel %vm1476, %v1478, %v1474
        %v1480 = vmul.f32 1.0, %v1479
        %v1481 = vrcp.pop %v1409
        %v1482 = vmul.f32 %v1409, %v1481
        %v1483 = vsub.f32 1.0, %v1482
        %v1484 = vmul.f32 %v1481, %v1483
        %v1485 = vadd.f32 %v1481, %v1484
        %vm1486 = vweird.f32 %v1409
        %vm1487 = vweird.f32 %v1481
        %vm1488 = vmor %vm1486, %vm1487
        %v1489 = vsel %vm1488, %v1481, %v1485
        %v1490 = vand.u32 2147483647, %v1409
        %vm1491 = vcmp.eq.f32.partialorder %v1490, 8.507059e+37
        %v1492 = vand.u32 %v1409, 2147483648
        %v1493 = vor.u32 1.1754944e-38, %v1492
        %v1494 = vsel %vm1491, %v1493, %v1489
        %v1495 = vmul.f32 1.0, %v1494
        %v1496 = vrcp.pop %v1410
        %v1497 = vmul.f32 %v1410, %v1496
        %v1498 = vsub.f32 1.0, %v1497
        %v1499 = vmul.f32 %v1496, %v1498
        %v1500 = vadd.f32 %v1496, %v1499
        %vm1501 = vweird.f32 %v1410
        %vm1502 = vweird.f32 %v1496
        %vm1503 = vmor %vm1501, %vm1502
        %v1504 = vsel %vm1503, %v1496, %v1500
        %v1505 = vand.u32 2147483647, %v1410
        %vm1506 = vcmp.eq.f32.partialorder %v1505, 8.507059e+37
        %v1507 = vand.u32 %v1410, 2147483648
        %v1508 = vor.u32 1.1754944e-38, %v1507
        %v1509 = vsel %vm1506, %v1508, %v1504
        %v1510 = vmul.f32 1.0, %v1509
        %v1511 = vrcp.pop %v1411
        %v1512 = vmul.f32 %v1411, %v1511
        %v1513 = vsub.f32 1.0, %v1512
        %v1514 = vmul.f32 %v1511, %v1513
        %v1515 = vadd.f32 %v1511, %v1514
        %vm1516 = vweird.f32 %v1411
        %vm1517 = vweird.f32 %v1511
        %vm1518 = vmor %vm1516, %vm1517
        %v1519 = vsel %vm1518, %v1511, %v1515
        %v1520 = vand.u32 2147483647, %v1411
        %vm1521 = vcmp.eq.f32.partialorder %v1520, 8.507059e+37
        %v1522 = vand.u32 %v1411, 2147483648
        %v1523 = vor.u32 1.1754944e-38, %v1522
        %v1524 = vsel %vm1521, %v1523, %v1519
        %v1525 = vmul.f32 1.0, %v1524
        %v1526 = vrcp.pop %v1412
        %v1527 = vmul.f32 %v1412, %v1526
        %v1528 = vsub.f32 1.0, %v1527
        %v1529 = vmul.f32 %v1526, %v1528
        %v1530 = vadd.f32 %v1526, %v1529
        %vm1531 = vweird.f32 %v1412
        %vm1532 = vweird.f32 %v1526
        %vm1533 = vmor %vm1531, %vm1532
        %v1534 = vsel %vm1533, %v1526, %v1530
        %v1535 = vand.u32 2147483647, %v1412
        %vm1536 = vcmp.eq.f32.partialorder %v1535, 8.507059e+37
        %v1537 = vand.u32 %v1412, 2147483648
        %v1538 = vor.u32 1.1754944e-38, %v1537
        %v1539 = vsel %vm1536, %v1538, %v1534
        %v1540 = vmul.f32 1.0, %v1539
        %v1541 = vrcp.pop %v1413
        %v1542 = vmul.f32 %v1413, %v1541
        %v1543 = vsub.f32 1.0, %v1542
        %v1544 = vmul.f32 %v1541, %v1543
        %v1545 = vadd.f32 %v1541, %v1544
        %vm1546 = vweird.f32 %v1413
        %vm1547 = vweird.f32 %v1541
        %vm1548 = vmor %vm1546, %vm1547
        %v1549 = vsel %vm1548, %v1541, %v1545
        %v1550 = vand.u32 2147483647, %v1413
        %vm1551 = vcmp.eq.f32.partialorder %v1550, 8.507059e+37
        %v1552 = vand.u32 %v1413, 2147483648
        %v1553 = vor.u32 1.1754944e-38, %v1552
        %v1554 = vsel %vm1551, %v1553, %v1549
        %v1555 = vmul.f32 1.0, %v1554
        %v1556 = vrcp.pop %v1414
        %v1557 = vmul.f32 %v1414, %v1556
        %v1558 = vsub.f32 1.0, %v1557
        %v1559 = vmul.f32 %v1556, %v1558
        %v1560 = vadd.f32 %v1556, %v1559
        %vm1561 = vweird.f32 %v1414
        %vm1562 = vweird.f32 %v1556
        %vm1563 = vmor %vm1561, %vm1562
        %v1564 = vsel %vm1563, %v1556, %v1560
        %v1565 = vand.u32 2147483647, %v1414
        %vm1566 = vcmp.eq.f32.partialorder %v1565, 8.507059e+37
        %v1567 = vand.u32 %v1414, 2147483648
        %v1568 = vor.u32 1.1754944e-38, %v1567
        %v1569 = vsel %vm1566, %v1568, %v1564
        %v1570 = vmul.f32 1.0, %v1569
        %v1571 = vrcp.pop %v1415
        %v1572 = vmul.f32 %v1415, %v1571
        %v1573 = vsub.f32 1.0, %v1572
        %v1574 = vmul.f32 %v1571, %v1573
        %v1575 = vadd.f32 %v1571, %v1574
        %vm1576 = vweird.f32 %v1415
        %vm1577 = vweird.f32 %v1571
        %vm1578 = vmor %vm1576, %vm1577
        %v1579 = vsel %vm1578, %v1571, %v1575
        %v1580 = vand.u32 2147483647, %v1415
        %vm1581 = vcmp.eq.f32.partialorder %v1580, 8.507059e+37
        %v1582 = vand.u32 %v1415, 2147483648
        %v1583 = vor.u32 1.1754944e-38, %v1582
        %v1584 = vsel %vm1581, %v1583, %v1579
        %v1585 = vmul.f32 1.0, %v1584
        %v1586 = vrcp.pop %v1416
        %v1587 = vmul.f32 %v1416, %v1586
        %v1588 = vsub.f32 1.0, %v1587
        %v1589 = vmul.f32 %v1586, %v1588
        %v1590 = vadd.f32 %v1586, %v1589
        %vm1591 = vweird.f32 %v1416
        %vm1592 = vweird.f32 %v1586
        %vm1593 = vmor %vm1591, %vm1592
        %v1594 = vsel %vm1593, %v1586, %v1590
        %v1595 = vand.u32 2147483647, %v1416
        %vm1596 = vcmp.eq.f32.partialorder %v1595, 8.507059e+37
        %v1597 = vand.u32 %v1416, 2147483648
        %v1598 = vor.u32 1.1754944e-38, %v1597
        %v1599 = vsel %vm1596, %v1598, %v1594
        %v1600 = vmul.f32 1.0, %v1599
        %v1601 = vrcp.pop %v1417
        %v1602 = vmul.f32 %v1417, %v1601
        %v1603 = vsub.f32 1.0, %v1602
        %v1604 = vmul.f32 %v1601, %v1603
        %v1605 = vadd.f32 %v1601, %v1604
        %vm1606 = vweird.f32 %v1417
        %vm1607 = vweird.f32 %v1601
        %vm1608 = vmor %vm1606, %vm1607
        %v1609 = vsel %vm1608, %v1601, %v1605
        %v1610 = vand.u32 2147483647, %v1417
        %vm1611 = vcmp.eq.f32.partialorder %v1610, 8.507059e+37
        %v1612 = vand.u32 %v1417, 2147483648
        %v1613 = vor.u32 1.1754944e-38, %v1612
        %v1614 = vsel %vm1611, %v1613, %v1609
        %v1615 = vmul.f32 1.0, %v1614
        %v1616 = vrcp.pop %v1418
        %v1617 = vmul.f32 %v1418, %v1616
        %v1618 = vsub.f32 1.0, %v1617
        %v1619 = vmul.f32 %v1616, %v1618
        %v1620 = vadd.f32 %v1616, %v1619
        %vm1621 = vweird.f32 %v1418
        %vm1622 = vweird.f32 %v1616
        %vm1623 = vmor %vm1621, %vm1622
        %v1624 = vsel %vm1623, %v1616, %v1620
        %v1625 = vand.u32 2147483647, %v1418
        %vm1626 = vcmp.eq.f32.partialorder %v1625, 8.507059e+37
        %v1627 = vand.u32 %v1418, 2147483648
        %v1628 = vor.u32 1.1754944e-38, %v1627
        %v1629 = vsel %vm1626, %v1628, %v1624
        %v1630 = vmul.f32 1.0, %v1629
        %v1631 = vrcp.pop %v1419
        %v1632 = vmul.f32 %v1419, %v1631
        %v1633 = vsub.f32 1.0, %v1632
        %v1634 = vmul.f32 %v1631, %v1633
        %v1635 = vadd.f32 %v1631, %v1634
        %vm1636 = vweird.f32 %v1419
        %vm1637 = vweird.f32 %v1631
        %vm1638 = vmor %vm1636, %vm1637
        %v1639 = vsel %vm1638, %v1631, %v1635
        %v1640 = vand.u32 2147483647, %v1419
        %vm1641 = vcmp.eq.f32.partialorder %v1640, 8.507059e+37
        %v1642 = vand.u32 %v1419, 2147483648
        %v1643 = vor.u32 1.1754944e-38, %v1642
        %v1644 = vsel %vm1641, %v1643, %v1639
        %v1645 = vmul.f32 1.0, %v1644
        %v1646 = vrcp.pop %v1420
        %v1647 = vmul.f32 %v1420, %v1646
        %v1648 = vsub.f32 1.0, %v1647
        %v1649 = vmul.f32 %v1646, %v1648
        %v1650 = vadd.f32 %v1646, %v1649
        %vm1651 = vweird.f32 %v1420
        %vm1652 = vweird.f32 %v1646
        %vm1653 = vmor %vm1651, %vm1652
        %v1654 = vsel %vm1653, %v1646, %v1650
        %v1655 = vand.u32 2147483647, %v1420
        %vm1656 = vcmp.eq.f32.partialorder %v1655, 8.507059e+37
        %v1657 = vand.u32 %v1420, 2147483648
        %v1658 = vor.u32 1.1754944e-38, %v1657
        %v1659 = vsel %vm1656, %v1658, %v1654
        %v1660 = vmul.f32 1.0, %v1659
        %1661 = vst [vmem:[%s223] sm:$0xff] %v1435
        %1662 = vst [vmem:[%s223 + $0x8] sm:$0xff] %v1450
        %1663 = vst [vmem:[%s223 + $0x10] sm:$0xff] %v1465
        %1664 = vst [vmem:[%s223 + $0x18] sm:$0xff] %v1480
        %1665 = vst [vmem:[%s223 + $0x20] sm:$0xff] %v1495
        %1666 = vst [vmem:[%s223 + $0x28] sm:$0xff] %v1510
        %1667 = vst [vmem:[%s223 + $0x30] sm:$0xff] %v1525
        %1668 = vst [vmem:[%s223 + $0x38] sm:$0xff] %v1540
        %1669 = vst [vmem:[%s223 + $0x40] sm:$0xff] %v1555
        %1670 = vst [vmem:[%s223 + $0x48] sm:$0xff] %v1570
        %1671 = vst [vmem:[%s223 + $0x50] sm:$0xff] %v1585
        %1672 = vst [vmem:[%s223 + $0x58] sm:$0xff] %v1600
        %1673 = vst [vmem:[%s223 + $0x60] sm:$0xff] %v1615
        %1674 = vst [vmem:[%s223 + $0x68] sm:$0xff] %v1630
        %1675 = vst [vmem:[%s223 + $0x70] sm:$0xff] %v1645
        %1676 = vst [vmem:[%s223 + $0x78] sm:$0xff] %v1660
        %s1677 = sand.u32 %s97, 1
        %s1678 = scalar_lea.sflag [#allocation4], %s1677
        %s1679 = sand.u32 %s97, 1
        %s1680 = smul.addr %s1679, 128
        %s1681 = scalar_lea.vmem [#allocation8], %s1680
        // Predicated region
        $region45: #{tpu_custom_call.1} parent=31 // pred_check
          %p1682 = pneg %p107
        $region46: #{tpu_custom_call.1} parent=31 // pred_check_branch
          %1684 = sbr.rel (%p1682) target = $region48
        $region47: #{tpu_custom_call.1} parent=31 // pred_region
          %s1685 = smul.u32 16, %s21
          %1687 = vsyncadd %s1678, 0
          %s1688 = smul.addr %s1685, 8
          %s1689 = scalar_lea.hbm %s3, %s1688
          %s1690 = sshll.u32 %s1681, 4
          %s1691 = int_to_ptr.vmem [resolvable:$true] %s1690
          %s1692 = sshll.u32 %s1689, 4
          %s1693 = int_to_ptr.hbm [resolvable:$true] %s1692
          %1698 = dma.vmem_to_hbm [thread:$0]  %s1691, 2048, %s1693, %s1678, 128, 128, 8
        $region48: #{tpu_custom_call.1} parent=31 // pred_fallthru
          _
      $region32: #{tpu_custom_call.1} parent=5 // pred_fallthru
        _
      %p1699 = scmp.le.s32.totalorder 2, %s16
      // Predicated region
      $region49: #{tpu_custom_call.1} parent=5 // pred_check
        %p1700 = pneg %p1699
      $region50: #{tpu_custom_call.1} parent=5 // pred_check_branch
        %1702 = sbr.rel (%p1700) target = $region52
      $region51: #{tpu_custom_call.1} parent=5 // pred_region
        %s1703 = ssub.s32 %s16, 2
        // Predicated region
        $region53: #{tpu_custom_call.1} parent=51 // pred_check
          %p1704 = pneg %p113
        $region54: #{tpu_custom_call.1} parent=51 // pred_check_branch
          %1706 = sbr.rel (%p1704) target = $region56
        $region55: #{tpu_custom_call.1} parent=51 // pred_region
          %s1707 = sand.u32 %s98, 1
          %s1708 = scalar_lea.sflag [#allocation4], %s1707
          %s1709 = sand.u32 %s98, 1
          %s1710 = smul.addr %s1709, 128
          %s1711 = scalar_lea.vmem [#allocation8], %s1710
          %1713 = dma.done %s1708, 2048
        $region56: #{tpu_custom_call.1} parent=51 // pred_fallthru
          _
      $region52: #{tpu_custom_call.1} parent=5 // pred_fallthru
        _
    $region6: #{tpu_custom_call.1} parent=1 // loop_footer
      %s20 = sadd.s32 1, %s16
    $region7: #{tpu_custom_call.1} parent=1 // loop_footer_branch
      %15 = sbr.rel target = $region3
    $region8: #{tpu_custom_call.1} parent=1 // loop_exit
      _
    %1714 = vsyncpa [#allocation3], 1
    %s1715 = scalar_lea.sflag [#allocation3], 1
    %1716 = vsyncpa %s1715, 1
    %1717 = vsyncpa [#allocation6], 1
    %1718 = vsyncpa [#allocation4], 1
    %s1719 = scalar_lea.sflag [#allocation4], 1
    %1720 = vsyncpa %s1719, 1

</llo_original>
